<compile_context>
chip_gen: v6e
topology: v6e:2x2x1
jax: 0.10.0
libtpu: 0.0.40
codegen_flags: <defaults>
</compile_context>

<pallas_src>
import jax
import jax.numpy as jnp
from jax.experimental import pallas as pl
from jax.experimental.pallas import tpu as pltpu


# ------------------------------ per-layer bodies ------------------------------
def _slstm_layer(xs, W, R, b, Wup, Wdn):
    """sLSTM block. xs: (T, Din) -> (T, H). W:(Din,4H) R:(H,4H) b:(1,4H)."""
    T = xs.shape[0]
    H = R.shape[0]

    # Hoisted: all 4 gate pre-activations for all timesteps in one MXU matmul.
    pre_x = jnp.dot(xs, W, preferred_element_type=jnp.float32) + b      # (T, 4H)

    h = jnp.zeros((1, H), jnp.float32)
    c = jnp.zeros((1, H), jnp.float32)
    n = jnp.zeros((1, H), jnp.float32)
    m = jnp.zeros((1, H), jnp.float32)

    # NOTE: T is small & static -> full unroll. R is loop-invariant (single MXU
    # weight push hoisted by the compiler). For T beyond a few dozen, switch to
    # lax.fori_loop(..., unroll=8) to bound live ranges.
    h_rows = []
    for t in range(T):
        pre = pre_x[t:t + 1, :] + jnp.dot(h, R, preferred_element_type=jnp.float32)
        i_t = pre[:, 0:H]
        f_t = pre[:, H:2 * H]
        z_t = jnp.tanh(pre[:, 2 * H:3 * H])
        o_t = jax.nn.sigmoid(pre[:, 3 * H:4 * H])

        # stabilized exponential gating
        m_new = jnp.maximum(f_t + m, i_t)
        i_g = jnp.exp(i_t - m_new)
        f_g = jnp.exp(f_t + m - m_new)

        c = f_g * c + i_g * z_t
        n = f_g * n + i_g
        h = o_t * c / jnp.maximum(jnp.abs(n), 1e-6)   # exact divide: error would recur
        m = m_new
        h_rows.append(h)                              # stays in vregs, no VMEM store

    hs = jnp.concatenate(h_rows, axis=0)              # (T, H), assembled once
    up = jax.nn.gelu(jnp.dot(hs, Wup, preferred_element_type=jnp.float32))
    return hs + jnp.dot(up, Wdn, preferred_element_type=jnp.float32)


def _mlstm_layer(xs, Wfused, bfused, Wup, Wdn):
    """mLSTM block in parallel (chunkwise linear-attention) form.

    xs: (T, Din) -> (T, H).  Wfused:(Din, 4H+2) = q|k|v|o|i|f fused along lanes.
    Mathematically identical to the serial stabilized recurrence
        m_t = max(f_t + m_{t-1}, i_t)
        C_t = exp(f_t+m_{t-1}-m_t) C_{t-1} + exp(i_t-m_t) k_t^T v_t
        n_t = exp(f_t+m_{t-1}-m_t) n_{t-1} + exp(i_t-m_t) k_t
        h_t = o_t * (q_t C_t) / max(|q_t . n_t|, 1)
    via  w_{t,s} = exp(F_t - F_s + i_s - m_t),  m_t = max(F_t, max_{s<=t}(F_t - F_s + i_s)).
    """
    T = xs.shape[0]
    H = Wup.shape[0]
    inv_sqrt_h = 1.0 / float(H) ** 0.5

    # One hoisted matmul for q/k/v/o and the scalar i/f gates (cols 4H, 4H+1).
    pre = jnp.dot(xs, Wfused, preferred_element_type=jnp.float32) + bfused   # (T, 4H+2)
    q_all = pre[:, 0:H]
    k_all = pre[:, H:2 * H] * inv_sqrt_h
    v_all = pre[:, 2 * H:3 * H]
    o_all = jax.nn.sigmoid(pre[:, 3 * H:4 * H])
    i_col = pre[:, 4 * H:4 * H + 1]                                          # (T, 1)
    f_col = pre[:, 4 * H + 1:4 * H + 2]                                      # (T, 1)

    # Causal structure on the (T, T) score matrix: row = t (query), col = s (key).
    row = jax.lax.broadcasted_iota(jnp.int32, (T, T), 0)
    col = jax.lax.broadcasted_iota(jnp.int32, (T, T), 1)
    causal = row >= col
    tri = causal.astype(jnp.float32)

    # Prefix sums of the forget pre-activations via a tiny lower-triangular matmul
    # (avoids relying on a cumsum lowering inside the kernel).
    F_col = jnp.dot(tri, f_col, preferred_element_type=jnp.float32)          # (T, 1)
    F_row = jnp.transpose(F_col)                                             # (1, T)
    i_row = jnp.transpose(i_col)                                             # (1, T)

    # Stabilized log decay matrix a[t,s] = F_t - F_s + i_s, stabilizer m_t.
    a = F_col - F_row + i_row                                                # (T, T)
    a_masked = jnp.where(causal, a, jnp.float32(-1e30))
    m_col = jnp.maximum(F_col, jnp.max(a_masked, axis=-1, keepdims=True))    # (T, 1)
    D = jnp.where(causal, jnp.exp(a - m_col), 0.0)                           # (T, T)

    # Scores S = Q K^T (k already scaled by 1/sqrt(H)); contract last dims -> no transpose.
    S = jax.lax.dot_general(q_all, k_all, (((1,), (1,)), ((), ())),
                            preferred_element_type=jnp.float32)              # (T, T)
    W_ts = D * S
    h_num = jnp.dot(W_ts, v_all, preferred_element_type=jnp.float32)         # (T, H)
    denom = jnp.maximum(jnp.abs(jnp.sum(W_ts, axis=-1, keepdims=True)), 1.0) # (T, 1)
    hs = o_all * h_num / denom                                               # (T, H)

    up = jax.nn.gelu(jnp.dot(hs, Wup, preferred_element_type=jnp.float32))
    return hs + jnp.dot(up, Wdn, preferred_element_type=jnp.float32)


# ------------------------------ fused stack kernel ------------------------------
def _make_stack_kernel(plan):
    """plan: static tuple of (kind, n_weight_arrays) per layer."""

    def kernel(*refs):
        # refs = (x_ref, *weight_refs, out_ref)
        x_ref = refs[0]
        out_ref = refs[-1]
        wrefs = refs[1:-1]

        act = x_ref[...]
        idx = 0
        for kind, nw in plan:
            ws = tuple(wrefs[idx + j][...] for j in range(nw))
            idx += nw
            if kind == "s":
                act = _slstm_layer(act, *ws)
            else:
                act = _mlstm_layer(act, *ws)

        # final hidden state of the last block (last timestep row)
        out_ref[...] = act[act.shape[0] - 1:, :]

    return kernel


def xlstm_model_forward(x, params):
    """x: (T, input_size) float32 -> (hidden_size,) float32 (last hidden state)."""
    H = params[0]["Wup"].shape[0]

    plan = []
    flat = []
    for p in params:
        if p["kind"] == "s":
            ws = (p["W"], p["R"], p["b"], p["Wup"], p["Wdn"])
        else:
            ws = (p["Wfused"], p["bfused"], p["Wup"], p["Wdn"])
        plan.append((p["kind"], len(ws)))
        flat.extend(ws)

    vmem = pl.BlockSpec(memory_space=pltpu.MemorySpace.VMEM)
    out = pl.pallas_call(
        _make_stack_kernel(tuple(plan)),
        out_shape=jax.ShapeDtypeStruct((1, H), jnp.float32),
        in_specs=[vmem] * (1 + len(flat)),
        out_specs=vmem,
    )(x, *flat)
    return out[0]


# ------------------------------ params (fused layout) ------------------------------
def init_params(key, input_size, hidden_size, proj_size, use_mlstm_vec):
    scale = 0.1
    params = []
    for i, use_m in enumerate(use_mlstm_vec):
        din = input_size if i == 0 else hidden_size
        key, k0, k1, k3, k4 = jax.random.split(key, 5)
        if use_m:
            kq, kg = jax.random.split(k0)
            # q | k | v | o | i | f fused along the output (lane) axis -> 4H+2 columns
            Wqkvo = scale * jax.random.normal(kq, (din, 4 * hidden_size), jnp.float32)
            Wg = scale * jax.random.normal(kg, (din, 2), jnp.float32)
            p = dict(
                kind="m",
                Wfused=jnp.concatenate([Wqkvo, Wg], axis=1),
                bfused=jnp.zeros((1, 4 * hidden_size + 2), jnp.float32),
                Wup=scale * jax.random.normal(k3, (hidden_size, proj_size), jnp.float32),
                Wdn=scale * jax.random.normal(k4, (proj_size, hidden_size), jnp.float32),
            )
        else:
            p = dict(
                kind="s",
                # i | f | z | o gate weights fused along the output axis -> 4H lanes
                W=scale * jax.random.normal(k0, (din, 4 * hidden_size), jnp.float32),
                R=scale * jax.random.normal(k1, (hidden_size, 4 * hidden_size), jnp.float32),
                b=jnp.zeros((1, 4 * hidden_size), jnp.float32),
                Wup=scale * jax.random.normal(k3, (hidden_size, proj_size), jnp.float32),
                Wdn=scale * jax.random.normal(k4, (proj_size, hidden_size), jnp.float32),
            )
        params.append(p)
    return params


if __name__ == "__main__":
    input_size = 16
    hidden_size = 32
    proj_size = 64
    num_layers = 2
    use_mlstm_vec = [False, True]   # layer 0: sLSTM, layer 1: mLSTM
    seq_len = 8

    key = jax.random.PRNGKey(0)
    key_x, key_p = jax.random.split(key)
    x = jax.random.normal(key_x, (seq_len, input_size), dtype=jnp.float32)
    params = init_params(key_p, input_size, hidden_size, proj_size, use_mlstm_vec)

    out = xlstm_model_forward(x, params)
    out = jax.block_until_ready(out)

    assert out.shape == (hidden_size,), out.shape
    assert out.dtype == jnp.float32
    assert bool(jnp.all(jnp.isfinite(out)))
    print("KERNEL_OK")
</pallas_src>

<mosaic_0001>
module attributes {stable_mosaic.version = 11 : i64} {
  func.func @kernel(%arg0: memref<8x16xf32, #tpu.memory_space<vmem>>, %arg1: memref<16x128xf32, #tpu.memory_space<vmem>>, %arg2: memref<32x128xf32, #tpu.memory_space<vmem>>, %arg3: memref<1x128xf32, #tpu.memory_space<vmem>>, %arg4: memref<32x64xf32, #tpu.memory_space<vmem>>, %arg5: memref<64x32xf32, #tpu.memory_space<vmem>>, %arg6: memref<32x130xf32, #tpu.memory_space<vmem>>, %arg7: memref<1x130xf32, #tpu.memory_space<vmem>>, %arg8: memref<32x64xf32, #tpu.memory_space<vmem>>, %arg9: memref<64x32xf32, #tpu.memory_space<vmem>>, %arg10: memref<1x32xf32, #tpu.memory_space<vmem>>) attributes {dimension_semantics = [], scalar_prefetch = 0 : i64, scratch_operands = 0 : i64, tpu.core_type = #tpu.core_type<tc>} {
    %c0 = arith.constant 0 : index
    %c0_0 = arith.constant 0 : index
    %0 = vector.load %arg0[%c0, %c0_0] : memref<8x16xf32, #tpu.memory_space<vmem>>, vector<8x16xf32>
    %c0_1 = arith.constant 0 : index
    %c0_2 = arith.constant 0 : index
    %1 = vector.load %arg1[%c0_1, %c0_2] : memref<16x128xf32, #tpu.memory_space<vmem>>, vector<16x128xf32>
    %c0_3 = arith.constant 0 : index
    %c0_4 = arith.constant 0 : index
    %2 = vector.load %arg2[%c0_3, %c0_4] : memref<32x128xf32, #tpu.memory_space<vmem>>, vector<32x128xf32>
    %c0_5 = arith.constant 0 : index
    %c0_6 = arith.constant 0 : index
    %3 = vector.load %arg3[%c0_5, %c0_6] : memref<1x128xf32, #tpu.memory_space<vmem>>, vector<1x128xf32>
    %c0_7 = arith.constant 0 : index
    %c0_8 = arith.constant 0 : index
    %4 = vector.load %arg4[%c0_7, %c0_8] : memref<32x64xf32, #tpu.memory_space<vmem>>, vector<32x64xf32>
    %c0_9 = arith.constant 0 : index
    %c0_10 = arith.constant 0 : index
    %5 = vector.load %arg5[%c0_9, %c0_10] : memref<64x32xf32, #tpu.memory_space<vmem>>, vector<64x32xf32>
    %cst = arith.constant dense<0.000000e+00> : vector<8x128xf32>
    %6 = tpu.matmul %0, %1, %cst {dimension_numbers = #tpu.dot_dimension_numbers<[1], [0], [0], [1], [0, 0, 1, 1], [], []>} : vector<8x16xf32>, vector<16x128xf32>, vector<8x128xf32> -> vector<8x128xf32>
    %7 = vector.broadcast %3 : vector<1x128xf32> to vector<8x128xf32>
    %8 = arith.addf %6, %7 : vector<8x128xf32>
    %cst_11 = arith.constant 0.000000e+00 : f32
    %9 = vector.broadcast %cst_11 : f32 to vector<1x32xf32>
    %cst_12 = arith.constant 0.000000e+00 : f32
    %10 = vector.broadcast %cst_12 : f32 to vector<1x32xf32>
    %cst_13 = arith.constant 0.000000e+00 : f32
    %11 = vector.broadcast %cst_13 : f32 to vector<1x32xf32>
    %cst_14 = arith.constant 0.000000e+00 : f32
    %12 = vector.broadcast %cst_14 : f32 to vector<1x32xf32>
    %13 = vector.extract_strided_slice %8 {offsets = [0, 0], sizes = [1, 128], strides = [1, 1]} : vector<8x128xf32> to vector<1x128xf32>
    %cst_15 = arith.constant dense<0.000000e+00> : vector<1x128xf32>
    %14 = tpu.matmul %9, %2, %cst_15 {dimension_numbers = #tpu.dot_dimension_numbers<[1], [0], [0], [1], [0, 0, 1, 1], [], []>} : vector<1x32xf32>, vector<32x128xf32>, vector<1x128xf32> -> vector<1x128xf32>
    %15 = arith.addf %13, %14 : vector<1x128xf32>
    %16 = vector.extract_strided_slice %15 {offsets = [0, 0], sizes = [1, 32], strides = [1, 1]} : vector<1x128xf32> to vector<1x32xf32>
    %17 = vector.extract_strided_slice %15 {offsets = [0, 32], sizes = [1, 32], strides = [1, 1]} : vector<1x128xf32> to vector<1x32xf32>
    %18 = vector.extract_strided_slice %15 {offsets = [0, 64], sizes = [1, 32], strides = [1, 1]} : vector<1x128xf32> to vector<1x32xf32>
    %19 = math.tanh %18 : vector<1x32xf32>
    %20 = vector.extract_strided_slice %15 {offsets = [0, 96], sizes = [1, 32], strides = [1, 1]} : vector<1x128xf32> to vector<1x32xf32>
    %21 = arith.negf %20 : vector<1x32xf32>
    %22 = math.exp %21 : vector<1x32xf32>
    %cst_16 = arith.constant 1.000000e+00 : f32
    %23 = vector.broadcast %cst_16 : f32 to vector<1x32xf32>
    %24 = arith.addf %23, %22 : vector<1x32xf32>
    %25 = arith.divf %23, %24 : vector<1x32xf32>
    %26 = arith.addf %17, %12 : vector<1x32xf32>
    %27 = arith.maximumf %26, %16 : vector<1x32xf32>
    %28 = arith.subf %16, %27 : vector<1x32xf32>
    %29 = math.exp %28 : vector<1x32xf32>
    %30 = arith.addf %17, %12 : vector<1x32xf32>
    %31 = arith.subf %30, %27 : vector<1x32xf32>
    %32 = math.exp %31 : vector<1x32xf32>
    %33 = arith.mulf %32, %10 : vector<1x32xf32>
    %34 = arith.mulf %29, %19 : vector<1x32xf32>
    %35 = arith.addf %33, %34 : vector<1x32xf32>
    %36 = arith.mulf %32, %11 : vector<1x32xf32>
    %37 = arith.addf %36, %29 : vector<1x32xf32>
    %38 = arith.mulf %25, %35 : vector<1x32xf32>
    %39 = math.absf %37 : vector<1x32xf32>
    %cst_17 = arith.constant 9.99999997E-7 : f32
    %40 = vector.broadcast %cst_17 : f32 to vector<1x32xf32>
    %41 = arith.maximumf %39, %40 : vector<1x32xf32>
    %42 = arith.divf %38, %41 : vector<1x32xf32>
    %43 = vector.extract_strided_slice %8 {offsets = [1, 0], sizes = [1, 128], strides = [1, 1]} : vector<8x128xf32> to vector<1x128xf32>
    %cst_18 = arith.constant dense<0.000000e+00> : vector<1x128xf32>
    %44 = tpu.matmul %42, %2, %cst_18 {dimension_numbers = #tpu.dot_dimension_numbers<[1], [0], [0], [1], [0, 0, 1, 1], [], []>} : vector<1x32xf32>, vector<32x128xf32>, vector<1x128xf32> -> vector<1x128xf32>
    %45 = arith.addf %43, %44 : vector<1x128xf32>
    %46 = vector.extract_strided_slice %45 {offsets = [0, 0], sizes = [1, 32], strides = [1, 1]} : vector<1x128xf32> to vector<1x32xf32>
    %47 = vector.extract_strided_slice %45 {offsets = [0, 32], sizes = [1, 32], strides = [1, 1]} : vector<1x128xf32> to vector<1x32xf32>
    %48 = vector.extract_strided_slice %45 {offsets = [0, 64], sizes = [1, 32], strides = [1, 1]} : vector<1x128xf32> to vector<1x32xf32>
    %49 = math.tanh %48 : vector<1x32xf32>
    %50 = vector.extract_strided_slice %45 {offsets = [0, 96], sizes = [1, 32], strides = [1, 1]} : vector<1x128xf32> to vector<1x32xf32>
    %51 = arith.negf %50 : vector<1x32xf32>
    %52 = math.exp %51 : vector<1x32xf32>
    %cst_19 = arith.constant 1.000000e+00 : f32
    %53 = vector.broadcast %cst_19 : f32 to vector<1x32xf32>
    %54 = arith.addf %53, %52 : vector<1x32xf32>
    %55 = arith.divf %53, %54 : vector<1x32xf32>
    %56 = arith.addf %47, %27 : vector<1x32xf32>
    %57 = arith.maximumf %56, %46 : vector<1x32xf32>
    %58 = arith.subf %46, %57 : vector<1x32xf32>
    %59 = math.exp %58 : vector<1x32xf32>
    %60 = arith.addf %47, %27 : vector<1x32xf32>
    %61 = arith.subf %60, %57 : vector<1x32xf32>
    %62 = math.exp %61 : vector<1x32xf32>
    %63 = arith.mulf %62, %35 : vector<1x32xf32>
    %64 = arith.mulf %59, %49 : vector<1x32xf32>
    %65 = arith.addf %63, %64 : vector<1x32xf32>
    %66 = arith.mulf %62, %37 : vector<1x32xf32>
    %67 = arith.addf %66, %59 : vector<1x32xf32>
    %68 = arith.mulf %55, %65 : vector<1x32xf32>
    %69 = math.absf %67 : vector<1x32xf32>
    %cst_20 = arith.constant 9.99999997E-7 : f32
    %70 = vector.broadcast %cst_20 : f32 to vector<1x32xf32>
    %71 = arith.maximumf %69, %70 : vector<1x32xf32>
    %72 = arith.divf %68, %71 : vector<1x32xf32>
    %73 = vector.extract_strided_slice %8 {offsets = [2, 0], sizes = [1, 128], strides = [1, 1]} : vector<8x128xf32> to vector<1x128xf32>
    %cst_21 = arith.constant dense<0.000000e+00> : vector<1x128xf32>
    %74 = tpu.matmul %72, %2, %cst_21 {dimension_numbers = #tpu.dot_dimension_numbers<[1], [0], [0], [1], [0, 0, 1, 1], [], []>} : vector<1x32xf32>, vector<32x128xf32>, vector<1x128xf32> -> vector<1x128xf32>
    %75 = arith.addf %73, %74 : vector<1x128xf32>
    %76 = vector.extract_strided_slice %75 {offsets = [0, 0], sizes = [1, 32], strides = [1, 1]} : vector<1x128xf32> to vector<1x32xf32>
    %77 = vector.extract_strided_slice %75 {offsets = [0, 32], sizes = [1, 32], strides = [1, 1]} : vector<1x128xf32> to vector<1x32xf32>
    %78 = vector.extract_strided_slice %75 {offsets = [0, 64], sizes = [1, 32], strides = [1, 1]} : vector<1x128xf32> to vector<1x32xf32>
    %79 = math.tanh %78 : vector<1x32xf32>
    %80 = vector.extract_strided_slice %75 {offsets = [0, 96], sizes = [1, 32], strides = [1, 1]} : vector<1x128xf32> to vector<1x32xf32>
    %81 = arith.negf %80 : vector<1x32xf32>
    %82 = math.exp %81 : vector<1x32xf32>
    %cst_22 = arith.constant 1.000000e+00 : f32
    %83 = vector.broadcast %cst_22 : f32 to vector<1x32xf32>
    %84 = arith.addf %83, %82 : vector<1x32xf32>
    %85 = arith.divf %83, %84 : vector<1x32xf32>
    %86 = arith.addf %77, %57 : vector<1x32xf32>
    %87 = arith.maximumf %86, %76 : vector<1x32xf32>
    %88 = arith.subf %76, %87 : vector<1x32xf32>
    %89 = math.exp %88 : vector<1x32xf32>
    %90 = arith.addf %77, %57 : vector<1x32xf32>
    %91 = arith.subf %90, %87 : vector<1x32xf32>
    %92 = math.exp %91 : vector<1x32xf32>
    %93 = arith.mulf %92, %65 : vector<1x32xf32>
    %94 = arith.mulf %89, %79 : vector<1x32xf32>
    %95 = arith.addf %93, %94 : vector<1x32xf32>
    %96 = arith.mulf %92, %67 : vector<1x32xf32>
    %97 = arith.addf %96, %89 : vector<1x32xf32>
    %98 = arith.mulf %85, %95 : vector<1x32xf32>
    %99 = math.absf %97 : vector<1x32xf32>
    %cst_23 = arith.constant 9.99999997E-7 : f32
    %100 = vector.broadcast %cst_23 : f32 to vector<1x32xf32>
    %101 = arith.maximumf %99, %100 : vector<1x32xf32>
    %102 = arith.divf %98, %101 : vector<1x32xf32>
    %103 = vector.extract_strided_slice %8 {offsets = [3, 0], sizes = [1, 128], strides = [1, 1]} : vector<8x128xf32> to vector<1x128xf32>
    %cst_24 = arith.constant dense<0.000000e+00> : vector<1x128xf32>
    %104 = tpu.matmul %102, %2, %cst_24 {dimension_numbers = #tpu.dot_dimension_numbers<[1], [0], [0], [1], [0, 0, 1, 1], [], []>} : vector<1x32xf32>, vector<32x128xf32>, vector<1x128xf32> -> vector<1x128xf32>
    %105 = arith.addf %103, %104 : vector<1x128xf32>
    %106 = vector.extract_strided_slice %105 {offsets = [0, 0], sizes = [1, 32], strides = [1, 1]} : vector<1x128xf32> to vector<1x32xf32>
    %107 = vector.extract_strided_slice %105 {offsets = [0, 32], sizes = [1, 32], strides = [1, 1]} : vector<1x128xf32> to vector<1x32xf32>
    %108 = vector.extract_strided_slice %105 {offsets = [0, 64], sizes = [1, 32], strides = [1, 1]} : vector<1x128xf32> to vector<1x32xf32>
    %109 = math.tanh %108 : vector<1x32xf32>
    %110 = vector.extract_strided_slice %105 {offsets = [0, 96], sizes = [1, 32], strides = [1, 1]} : vector<1x128xf32> to vector<1x32xf32>
    %111 = arith.negf %110 : vector<1x32xf32>
    %112 = math.exp %111 : vector<1x32xf32>
    %cst_25 = arith.constant 1.000000e+00 : f32
    %113 = vector.broadcast %cst_25 : f32 to vector<1x32xf32>
    %114 = arith.addf %113, %112 : vector<1x32xf32>
    %115 = arith.divf %113, %114 : vector<1x32xf32>
    %116 = arith.addf %107, %87 : vector<1x32xf32>
    %117 = arith.maximumf %116, %106 : vector<1x32xf32>
    %118 = arith.subf %106, %117 : vector<1x32xf32>
    %119 = math.exp %118 : vector<1x32xf32>
    %120 = arith.addf %107, %87 : vector<1x32xf32>
    %121 = arith.subf %120, %117 : vector<1x32xf32>
    %122 = math.exp %121 : vector<1x32xf32>
    %123 = arith.mulf %122, %95 : vector<1x32xf32>
    %124 = arith.mulf %119, %109 : vector<1x32xf32>
    %125 = arith.addf %123, %124 : vector<1x32xf32>
    %126 = arith.mulf %122, %97 : vector<1x32xf32>
    %127 = arith.addf %126, %119 : vector<1x32xf32>
    %128 = arith.mulf %115, %125 : vector<1x32xf32>
    %129 = math.absf %127 : vector<1x32xf32>
    %cst_26 = arith.constant 9.99999997E-7 : f32
    %130 = vector.broadcast %cst_26 : f32 to vector<1x32xf32>
    %131 = arith.maximumf %129, %130 : vector<1x32xf32>
    %132 = arith.divf %128, %131 : vector<1x32xf32>
    %133 = vector.extract_strided_slice %8 {offsets = [4, 0], sizes = [1, 128], strides = [1, 1]} : vector<8x128xf32> to vector<1x128xf32>
    %cst_27 = arith.constant dense<0.000000e+00> : vector<1x128xf32>
    %134 = tpu.matmul %132, %2, %cst_27 {dimension_numbers = #tpu.dot_dimension_numbers<[1], [0], [0], [1], [0, 0, 1, 1], [], []>} : vector<1x32xf32>, vector<32x128xf32>, vector<1x128xf32> -> vector<1x128xf32>
    %135 = arith.addf %133, %134 : vector<1x128xf32>
    %136 = vector.extract_strided_slice %135 {offsets = [0, 0], sizes = [1, 32], strides = [1, 1]} : vector<1x128xf32> to vector<1x32xf32>
    %137 = vector.extract_strided_slice %135 {offsets = [0, 32], sizes = [1, 32], strides = [1, 1]} : vector<1x128xf32> to vector<1x32xf32>
    %138 = vector.extract_strided_slice %135 {offsets = [0, 64], sizes = [1, 32], strides = [1, 1]} : vector<1x128xf32> to vector<1x32xf32>
    %139 = math.tanh %138 : vector<1x32xf32>
    %140 = vector.extract_strided_slice %135 {offsets = [0, 96], sizes = [1, 32], strides = [1, 1]} : vector<1x128xf32> to vector<1x32xf32>
    %141 = arith.negf %140 : vector<1x32xf32>
    %142 = math.exp %141 : vector<1x32xf32>
    %cst_28 = arith.constant 1.000000e+00 : f32
    %143 = vector.broadcast %cst_28 : f32 to vector<1x32xf32>
    %144 = arith.addf %143, %142 : vector<1x32xf32>
    %145 = arith.divf %143, %144 : vector<1x32xf32>
    %146 = arith.addf %137, %117 : vector<1x32xf32>
    %147 = arith.maximumf %146, %136 : vector<1x32xf32>
    %148 = arith.subf %136, %147 : vector<1x32xf32>
    %149 = math.exp %148 : vector<1x32xf32>
    %150 = arith.addf %137, %117 : vector<1x32xf32>
    %151 = arith.subf %150, %147 : vector<1x32xf32>
    %152 = math.exp %151 : vector<1x32xf32>
    %153 = arith.mulf %152, %125 : vector<1x32xf32>
    %154 = arith.mulf %149, %139 : vector<1x32xf32>
    %155 = arith.addf %153, %154 : vector<1x32xf32>
    %156 = arith.mulf %152, %127 : vector<1x32xf32>
    %157 = arith.addf %156, %149 : vector<1x32xf32>
    %158 = arith.mulf %145, %155 : vector<1x32xf32>
    %159 = math.absf %157 : vector<1x32xf32>
    %cst_29 = arith.constant 9.99999997E-7 : f32
    %160 = vector.broadcast %cst_29 : f32 to vector<1x32xf32>
    %161 = arith.maximumf %159, %160 : vector<1x32xf32>
    %162 = arith.divf %158, %161 : vector<1x32xf32>
    %163 = vector.extract_strided_slice %8 {offsets = [5, 0], sizes = [1, 128], strides = [1, 1]} : vector<8x128xf32> to vector<1x128xf32>
    %cst_30 = arith.constant dense<0.000000e+00> : vector<1x128xf32>
    %164 = tpu.matmul %162, %2, %cst_30 {dimension_numbers = #tpu.dot_dimension_numbers<[1], [0], [0], [1], [0, 0, 1, 1], [], []>} : vector<1x32xf32>, vector<32x128xf32>, vector<1x128xf32> -> vector<1x128xf32>
    %165 = arith.addf %163, %164 : vector<1x128xf32>
    %166 = vector.extract_strided_slice %165 {offsets = [0, 0], sizes = [1, 32], strides = [1, 1]} : vector<1x128xf32> to vector<1x32xf32>
    %167 = vector.extract_strided_slice %165 {offsets = [0, 32], sizes = [1, 32], strides = [1, 1]} : vector<1x128xf32> to vector<1x32xf32>
    %168 = vector.extract_strided_slice %165 {offsets = [0, 64], sizes = [1, 32], strides = [1, 1]} : vector<1x128xf32> to vector<1x32xf32>
    %169 = math.tanh %168 : vector<1x32xf32>
    %170 = vector.extract_strided_slice %165 {offsets = [0, 96], sizes = [1, 32], strides = [1, 1]} : vector<1x128xf32> to vector<1x32xf32>
    %171 = arith.negf %170 : vector<1x32xf32>
    %172 = math.exp %171 : vector<1x32xf32>
    %cst_31 = arith.constant 1.000000e+00 : f32
    %173 = vector.broadcast %cst_31 : f32 to vector<1x32xf32>
    %174 = arith.addf %173, %172 : vector<1x32xf32>
    %175 = arith.divf %173, %174 : vector<1x32xf32>
    %176 = arith.addf %167, %147 : vector<1x32xf32>
    %177 = arith.maximumf %176, %166 : vector<1x32xf32>
    %178 = arith.subf %166, %177 : vector<1x32xf32>
    %179 = math.exp %178 : vector<1x32xf32>
    %180 = arith.addf %167, %147 : vector<1x32xf32>
    %181 = arith.subf %180, %177 : vector<1x32xf32>
    %182 = math.exp %181 : vector<1x32xf32>
    %183 = arith.mulf %182, %155 : vector<1x32xf32>
    %184 = arith.mulf %179, %169 : vector<1x32xf32>
    %185 = arith.addf %183, %184 : vector<1x32xf32>
    %186 = arith.mulf %182, %157 : vector<1x32xf32>
    %187 = arith.addf %186, %179 : vector<1x32xf32>
    %188 = arith.mulf %175, %185 : vector<1x32xf32>
    %189 = math.absf %187 : vector<1x32xf32>
    %cst_32 = arith.constant 9.99999997E-7 : f32
    %190 = vector.broadcast %cst_32 : f32 to vector<1x32xf32>
    %191 = arith.maximumf %189, %190 : vector<1x32xf32>
    %192 = arith.divf %188, %191 : vector<1x32xf32>
    %193 = vector.extract_strided_slice %8 {offsets = [6, 0], sizes = [1, 128], strides = [1, 1]} : vector<8x128xf32> to vector<1x128xf32>
    %cst_33 = arith.constant dense<0.000000e+00> : vector<1x128xf32>
    %194 = tpu.matmul %192, %2, %cst_33 {dimension_numbers = #tpu.dot_dimension_numbers<[1], [0], [0], [1], [0, 0, 1, 1], [], []>} : vector<1x32xf32>, vector<32x128xf32>, vector<1x128xf32> -> vector<1x128xf32>
    %195 = arith.addf %193, %194 : vector<1x128xf32>
    %196 = vector.extract_strided_slice %195 {offsets = [0, 0], sizes = [1, 32], strides = [1, 1]} : vector<1x128xf32> to vector<1x32xf32>
    %197 = vector.extract_strided_slice %195 {offsets = [0, 32], sizes = [1, 32], strides = [1, 1]} : vector<1x128xf32> to vector<1x32xf32>
    %198 = vector.extract_strided_slice %195 {offsets = [0, 64], sizes = [1, 32], strides = [1, 1]} : vector<1x128xf32> to vector<1x32xf32>
    %199 = math.tanh %198 : vector<1x32xf32>
    %200 = vector.extract_strided_slice %195 {offsets = [0, 96], sizes = [1, 32], strides = [1, 1]} : vector<1x128xf32> to vector<1x32xf32>
    %201 = arith.negf %200 : vector<1x32xf32>
    %202 = math.exp %201 : vector<1x32xf32>
    %cst_34 = arith.constant 1.000000e+00 : f32
    %203 = vector.broadcast %cst_34 : f32 to vector<1x32xf32>
    %204 = arith.addf %203, %202 : vector<1x32xf32>
    %205 = arith.divf %203, %204 : vector<1x32xf32>
    %206 = arith.addf %197, %177 : vector<1x32xf32>
    %207 = arith.maximumf %206, %196 : vector<1x32xf32>
    %208 = arith.subf %196, %207 : vector<1x32xf32>
    %209 = math.exp %208 : vector<1x32xf32>
    %210 = arith.addf %197, %177 : vector<1x32xf32>
    %211 = arith.subf %210, %207 : vector<1x32xf32>
    %212 = math.exp %211 : vector<1x32xf32>
    %213 = arith.mulf %212, %185 : vector<1x32xf32>
    %214 = arith.mulf %209, %199 : vector<1x32xf32>
    %215 = arith.addf %213, %214 : vector<1x32xf32>
    %216 = arith.mulf %212, %187 : vector<1x32xf32>
    %217 = arith.addf %216, %209 : vector<1x32xf32>
    %218 = arith.mulf %205, %215 : vector<1x32xf32>
    %219 = math.absf %217 : vector<1x32xf32>
    %cst_35 = arith.constant 9.99999997E-7 : f32
    %220 = vector.broadcast %cst_35 : f32 to vector<1x32xf32>
    %221 = arith.maximumf %219, %220 : vector<1x32xf32>
    %222 = arith.divf %218, %221 : vector<1x32xf32>
    %223 = vector.extract_strided_slice %8 {offsets = [7, 0], sizes = [1, 128], strides = [1, 1]} : vector<8x128xf32> to vector<1x128xf32>
    %cst_36 = arith.constant dense<0.000000e+00> : vector<1x128xf32>
    %224 = tpu.matmul %222, %2, %cst_36 {dimension_numbers = #tpu.dot_dimension_numbers<[1], [0], [0], [1], [0, 0, 1, 1], [], []>} : vector<1x32xf32>, vector<32x128xf32>, vector<1x128xf32> -> vector<1x128xf32>
    %225 = arith.addf %223, %224 : vector<1x128xf32>
    %226 = vector.extract_strided_slice %225 {offsets = [0, 0], sizes = [1, 32], strides = [1, 1]} : vector<1x128xf32> to vector<1x32xf32>
    %227 = vector.extract_strided_slice %225 {offsets = [0, 32], sizes = [1, 32], strides = [1, 1]} : vector<1x128xf32> to vector<1x32xf32>
    %228 = vector.extract_strided_slice %225 {offsets = [0, 64], sizes = [1, 32], strides = [1, 1]} : vector<1x128xf32> to vector<1x32xf32>
    %229 = math.tanh %228 : vector<1x32xf32>
    %230 = vector.extract_strided_slice %225 {offsets = [0, 96], sizes = [1, 32], strides = [1, 1]} : vector<1x128xf32> to vector<1x32xf32>
    %231 = arith.negf %230 : vector<1x32xf32>
    %232 = math.exp %231 : vector<1x32xf32>
    %cst_37 = arith.constant 1.000000e+00 : f32
    %233 = vector.broadcast %cst_37 : f32 to vector<1x32xf32>
    %234 = arith.addf %233, %232 : vector<1x32xf32>
    %235 = arith.divf %233, %234 : vector<1x32xf32>
    %236 = arith.addf %227, %207 : vector<1x32xf32>
    %237 = arith.maximumf %236, %226 : vector<1x32xf32>
    %238 = arith.subf %226, %237 : vector<1x32xf32>
    %239 = math.exp %238 : vector<1x32xf32>
    %240 = arith.addf %227, %207 : vector<1x32xf32>
    %241 = arith.subf %240, %237 : vector<1x32xf32>
    %242 = math.exp %241 : vector<1x32xf32>
    %243 = arith.mulf %242, %215 : vector<1x32xf32>
    %244 = arith.mulf %239, %229 : vector<1x32xf32>
    %245 = arith.addf %243, %244 : vector<1x32xf32>
    %246 = arith.mulf %242, %217 : vector<1x32xf32>
    %247 = arith.addf %246, %239 : vector<1x32xf32>
    %248 = arith.mulf %235, %245 : vector<1x32xf32>
    %249 = math.absf %247 : vector<1x32xf32>
    %cst_38 = arith.constant 9.99999997E-7 : f32
    %250 = vector.broadcast %cst_38 : f32 to vector<1x32xf32>
    %251 = arith.maximumf %249, %250 : vector<1x32xf32>
    %252 = arith.divf %248, %251 : vector<1x32xf32>
    %253 = tpu.concatenate %42, %72, %102, %132, %162, %192, %222, %252 in 0 : vector<1x32xf32>, vector<1x32xf32>, vector<1x32xf32>, vector<1x32xf32>, vector<1x32xf32>, vector<1x32xf32>, vector<1x32xf32>, vector<1x32xf32> -> vector<8x32xf32>
    %cst_39 = arith.constant dense<0.000000e+00> : vector<8x64xf32>
    %254 = tpu.matmul %253, %4, %cst_39 {dimension_numbers = #tpu.dot_dimension_numbers<[1], [0], [0], [1], [0, 0, 1, 1], [], []>} : vector<8x32xf32>, vector<32x64xf32>, vector<8x64xf32> -> vector<8x64xf32>
    %255 = arith.mulf %254, %254 : vector<8x64xf32>
    %256 = arith.mulf %254, %255 : vector<8x64xf32>
    %cst_40 = arith.constant 4.471500e-02 : f32
    %257 = vector.broadcast %cst_40 : f32 to vector<8x64xf32>
    %258 = arith.mulf %257, %256 : vector<8x64xf32>
    %259 = arith.addf %254, %258 : vector<8x64xf32>
    %cst_41 = arith.constant 0.797884583 : f32
    %260 = vector.broadcast %cst_41 : f32 to vector<8x64xf32>
    %261 = arith.mulf %260, %259 : vector<8x64xf32>
    %262 = math.tanh %261 : vector<8x64xf32>
    %cst_42 = arith.constant 1.000000e+00 : f32
    %263 = vector.broadcast %cst_42 : f32 to vector<8x64xf32>
    %264 = arith.addf %263, %262 : vector<8x64xf32>
    %cst_43 = arith.constant 5.000000e-01 : f32
    %265 = vector.broadcast %cst_43 : f32 to vector<8x64xf32>
    %266 = arith.mulf %265, %264 : vector<8x64xf32>
    %267 = arith.mulf %254, %266 : vector<8x64xf32>
    %cst_44 = arith.constant dense<0.000000e+00> : vector<8x32xf32>
    %268 = tpu.matmul %267, %5, %cst_44 {dimension_numbers = #tpu.dot_dimension_numbers<[1], [0], [0], [1], [0, 0, 1, 1], [], []>} : vector<8x64xf32>, vector<64x32xf32>, vector<8x32xf32> -> vector<8x32xf32>
    %269 = arith.addf %253, %268 : vector<8x32xf32>
    %c0_45 = arith.constant 0 : index
    %c0_46 = arith.constant 0 : index
    %270 = vector.load %arg6[%c0_45, %c0_46] : memref<32x130xf32, #tpu.memory_space<vmem>>, vector<32x130xf32>
    %c0_47 = arith.constant 0 : index
    %c0_48 = arith.constant 0 : index
    %271 = vector.load %arg7[%c0_47, %c0_48] : memref<1x130xf32, #tpu.memory_space<vmem>>, vector<1x130xf32>
    %c0_49 = arith.constant 0 : index
    %c0_50 = arith.constant 0 : index
    %272 = vector.load %arg8[%c0_49, %c0_50] : memref<32x64xf32, #tpu.memory_space<vmem>>, vector<32x64xf32>
    %c0_51 = arith.constant 0 : index
    %c0_52 = arith.constant 0 : index
    %273 = vector.load %arg9[%c0_51, %c0_52] : memref<64x32xf32, #tpu.memory_space<vmem>>, vector<64x32xf32>
    %cst_53 = arith.constant dense<0.000000e+00> : vector<8x130xf32>
    %274 = tpu.matmul %269, %270, %cst_53 {dimension_numbers = #tpu.dot_dimension_numbers<[1], [0], [0], [1], [0, 0, 1, 1], [], []>} : vector<8x32xf32>, vector<32x130xf32>, vector<8x130xf32> -> vector<8x130xf32>
    %275 = vector.broadcast %271 : vector<1x130xf32> to vector<8x130xf32>
    %276 = arith.addf %274, %275 : vector<8x130xf32>
    %277 = vector.extract_strided_slice %276 {offsets = [0, 0], sizes = [8, 32], strides = [1, 1]} : vector<8x130xf32> to vector<8x32xf32>
    %278 = vector.extract_strided_slice %276 {offsets = [0, 32], sizes = [8, 32], strides = [1, 1]} : vector<8x130xf32> to vector<8x32xf32>
    %cst_54 = arith.constant 0.176776692 : f32
    %279 = vector.broadcast %cst_54 : f32 to vector<8x32xf32>
    %280 = arith.mulf %278, %279 : vector<8x32xf32>
    %281 = vector.extract_strided_slice %276 {offsets = [0, 64], sizes = [8, 32], strides = [1, 1]} : vector<8x130xf32> to vector<8x32xf32>
    %282 = vector.extract_strided_slice %276 {offsets = [0, 96], sizes = [8, 32], strides = [1, 1]} : vector<8x130xf32> to vector<8x32xf32>
    %283 = arith.negf %282 : vector<8x32xf32>
    %284 = math.exp %283 : vector<8x32xf32>
    %cst_55 = arith.constant 1.000000e+00 : f32
    %285 = vector.broadcast %cst_55 : f32 to vector<8x32xf32>
    %286 = arith.addf %285, %284 : vector<8x32xf32>
    %287 = arith.divf %285, %286 : vector<8x32xf32>
    %288 = vector.extract_strided_slice %276 {offsets = [0, 128], sizes = [8, 1], strides = [1, 1]} : vector<8x130xf32> to vector<8x1xf32>
    %289 = vector.extract_strided_slice %276 {offsets = [0, 129], sizes = [8, 1], strides = [1, 1]} : vector<8x130xf32> to vector<8x1xf32>
    %290 = tpu.iota {dimensions = array<i32: 0>} : vector<8x8xi32>
    %291 = tpu.iota {dimensions = array<i32: 1>} : vector<8x8xi32>
    %292 = arith.cmpi sge, %290, %291 : vector<8x8xi32>
    %293 = arith.extui %292 : vector<8x8xi1> to vector<8x8xi32>
    %294 = arith.sitofp %293 : vector<8x8xi32> to vector<8x8xf32>
    %cst_56 = arith.constant dense<0.000000e+00> : vector<8x1xf32>
    %295 = tpu.matmul %294, %289, %cst_56 {dimension_numbers = #tpu.dot_dimension_numbers<[1], [0], [0], [1], [0, 0, 1, 1], [], []>} : vector<8x8xf32>, vector<8x1xf32>, vector<8x1xf32> -> vector<8x1xf32>
    %296 = tpu.transpose %295, [1, 0] : vector<8x1xf32> -> vector<1x8xf32>
    %297 = tpu.transpose %288, [1, 0] : vector<8x1xf32> -> vector<1x8xf32>
    %298 = vector.broadcast %295 : vector<8x1xf32> to vector<8x8xf32>
    %299 = vector.broadcast %296 : vector<1x8xf32> to vector<8x8xf32>
    %300 = arith.subf %298, %299 : vector<8x8xf32>
    %301 = vector.broadcast %297 : vector<1x8xf32> to vector<8x8xf32>
    %302 = arith.addf %300, %301 : vector<8x8xf32>
    %cst_57 = arith.constant -1.000000e+30 : f32
    %303 = vector.broadcast %cst_57 : f32 to vector<8x8xf32>
    %304 = arith.select %292, %302, %303 : vector<8x8xi1>, vector<8x8xf32>
    %cst_58 = arith.constant dense<0xFF800000> : vector<8xf32>
    %305 = vector.multi_reduction <maximumf>, %304, %cst_58 [1] : vector<8x8xf32> to vector<8xf32>
    %306 = vector.shape_cast %305 : vector<8xf32> to vector<8x1xf32>
    %307 = arith.maximumf %295, %306 : vector<8x1xf32>
    %308 = vector.broadcast %307 : vector<8x1xf32> to vector<8x8xf32>
    %309 = arith.subf %302, %308 : vector<8x8xf32>
    %310 = math.exp %309 : vector<8x8xf32>
    %cst_59 = arith.constant 0.000000e+00 : f32
    %311 = vector.broadcast %cst_59 : f32 to vector<8x8xf32>
    %312 = arith.select %292, %310, %311 : vector<8x8xi1>, vector<8x8xf32>
    %cst_60 = arith.constant dense<0.000000e+00> : vector<8x8xf32>
    %313 = tpu.matmul %277, %280, %cst_60 {dimension_numbers = #tpu.dot_dimension_numbers<[1], [1], [0], [0], [0, 0, 1, 0], [], []>} : vector<8x32xf32>, vector<8x32xf32>, vector<8x8xf32> -> vector<8x8xf32>
    %314 = arith.mulf %312, %313 : vector<8x8xf32>
    %cst_61 = arith.constant dense<0.000000e+00> : vector<8x32xf32>
    %315 = tpu.matmul %314, %281, %cst_61 {dimension_numbers = #tpu.dot_dimension_numbers<[1], [0], [0], [1], [0, 0, 1, 1], [], []>} : vector<8x8xf32>, vector<8x32xf32>, vector<8x32xf32> -> vector<8x32xf32>
    %cst_62 = arith.constant dense<0.000000e+00> : vector<8xf32>
    %316 = vector.multi_reduction <add>, %314, %cst_62 [1] : vector<8x8xf32> to vector<8xf32>
    %317 = vector.shape_cast %316 : vector<8xf32> to vector<8x1xf32>
    %318 = math.absf %317 : vector<8x1xf32>
    %cst_63 = arith.constant 1.000000e+00 : f32
    %319 = vector.broadcast %cst_63 : f32 to vector<8x1xf32>
    %320 = arith.maximumf %318, %319 : vector<8x1xf32>
    %321 = arith.mulf %287, %315 : vector<8x32xf32>
    %322 = vector.broadcast %320 : vector<8x1xf32> to vector<8x32xf32>
    %323 = arith.divf %321, %322 : vector<8x32xf32>
    %cst_64 = arith.constant dense<0.000000e+00> : vector<8x64xf32>
    %324 = tpu.matmul %323, %272, %cst_64 {dimension_numbers = #tpu.dot_dimension_numbers<[1], [0], [0], [1], [0, 0, 1, 1], [], []>} : vector<8x32xf32>, vector<32x64xf32>, vector<8x64xf32> -> vector<8x64xf32>
    %325 = arith.mulf %324, %324 : vector<8x64xf32>
    %326 = arith.mulf %324, %325 : vector<8x64xf32>
    %cst_65 = arith.constant 4.471500e-02 : f32
    %327 = vector.broadcast %cst_65 : f32 to vector<8x64xf32>
    %328 = arith.mulf %327, %326 : vector<8x64xf32>
    %329 = arith.addf %324, %328 : vector<8x64xf32>
    %cst_66 = arith.constant 0.797884583 : f32
    %330 = vector.broadcast %cst_66 : f32 to vector<8x64xf32>
    %331 = arith.mulf %330, %329 : vector<8x64xf32>
    %332 = math.tanh %331 : vector<8x64xf32>
    %cst_67 = arith.constant 1.000000e+00 : f32
    %333 = vector.broadcast %cst_67 : f32 to vector<8x64xf32>
    %334 = arith.addf %333, %332 : vector<8x64xf32>
    %cst_68 = arith.constant 5.000000e-01 : f32
    %335 = vector.broadcast %cst_68 : f32 to vector<8x64xf32>
    %336 = arith.mulf %335, %334 : vector<8x64xf32>
    %337 = arith.mulf %324, %336 : vector<8x64xf32>
    %cst_69 = arith.constant dense<0.000000e+00> : vector<8x32xf32>
    %338 = tpu.matmul %337, %273, %cst_69 {dimension_numbers = #tpu.dot_dimension_numbers<[1], [0], [0], [1], [0, 0, 1, 1], [], []>} : vector<8x64xf32>, vector<64x32xf32>, vector<8x32xf32> -> vector<8x32xf32>
    %339 = arith.addf %323, %338 : vector<8x32xf32>
    %340 = vector.extract_strided_slice %339 {offsets = [7, 0], sizes = [1, 32], strides = [1, 1]} : vector<8x32xf32> to vector<1x32xf32>
    %c0_70 = arith.constant 0 : index
    %c0_71 = arith.constant 0 : index
    %341 = vector.load %arg10[%c0_70, %c0_71] : memref<1x32xf32, #tpu.memory_space<vmem>>, vector<1x32xf32>
    tpu.vector_store %arg10[%c0_70, %c0_71], %340 {strides = array<i32>} : memref<1x32xf32, #tpu.memory_space<vmem>>, vector<1x32xf32>,
    return
  }
}

</mosaic_0001>

<llo_original>
// kernel: tpu_custom_call.1
$region0: #{tpu_custom_call.1}
  #allocation0 [shape = 'u32[]', space=smem, size = 0x4, offset = 0x4, fixed_abs, tag = 'smem constant byte address 0x4 - core index']
  #allocation1 [shape = 'u32[144,128]{1,0:T(1,128)}', space=vmem, size = 0x12000, scoped, tag = 'internal scratch']
  %s0 = inlined_call_operand.hbm [shape: f32[8,16], index: 0, kind: input, shape index: {}]
  %s1 = inlined_call_operand.hbm [shape: f32[16,128], index: 1, kind: input, shape index: {}]
  %s2 = inlined_call_operand.vmem [shape: f32[32,128], index: 2, kind: input, shape index: {}]
  %s3 = inlined_call_operand.vmem [shape: f32[1,128], index: 3, kind: input, shape index: {}]
  %s4 = inlined_call_operand.vmem [shape: f32[32,64], index: 4, kind: input, shape index: {}]
  %s5 = inlined_call_operand.vmem [shape: f32[64,32], index: 5, kind: input, shape index: {}]
  %s6 = inlined_call_operand.vmem [shape: f32[32,130], index: 6, kind: input, shape index: {}]
  %s7 = inlined_call_operand.vmem [shape: f32[1,130], index: 7, kind: input, shape index: {}]
  %s8 = inlined_call_operand.vmem [shape: f32[32,64], index: 8, kind: input, shape index: {}]
  %s9 = inlined_call_operand.vmem [shape: f32[64,32], index: 9, kind: input, shape index: {}]
  %s10 = inlined_call_operand.hbm [shape: f32[1,32], index: 10, kind: output, shape index: {}]
  %s11 = sld [smem:[#allocation0]]
  $region58: #{tpu_custom_call.1} parent=0
    _
  %s13 = ssub.s32 1, %s11
  %s14 = scalar_select 0, %s13, %s11
  $region1: #{tpu_custom_call.1} parent=0
    #allocation2 [shape = 'u8[4096]{0}', space=vmem, size = 0x1000, scoped, tag = 'input window, operand 0, single buffered']
    #allocation3 [shape = 's32[1]{0}', space=sflag, size = 0x4, scoped, tag = 'scoped memory for tpu_custom_call.1']
    #allocation4 [shape = 's32[1]{0}', space=sflag, size = 0x4, scoped, tag = 'scoped memory for tpu_custom_call.1']
    #allocation5 [shape = 'u8[8192]{0}', space=vmem, size = 0x2000, scoped, tag = 'input window, operand 1, single buffered']
    #allocation6 [shape = 's32[1]{0}', space=sflag, size = 0x4, scoped, tag = 'scoped memory for tpu_custom_call.1']
    #allocation7 [shape = 'u8[512]{0}', space=vmem, size = 0x400, scoped, tag = 'output window, operand 0, single buffered']
    %15 = vsyncpa [#allocation3], 0
    %16 = vsyncpa [#allocation6], 0
    %17 = vsyncpa [#allocation4], 0
    // Predicated region
    $region2: #{tpu_custom_call.1} parent=1 // pred_check
      _
    $region3: #{tpu_custom_call.1} parent=1 // pred_check_branch
      %19 = sbr.rel (0) target = $region5
    $region4: #{tpu_custom_call.1} parent=1 // pred_region
      %s21 = ssub.s32 128, 128
      %22 = vsyncadd [#allocation3], %s21
      %s24 = sshll.u32 [#allocation2], 4
      %s25 = int_to_ptr.vmem [resolvable:$true] %s24
      %27 = dma.hbm_to_vmem [thread:$0]  %s0, 128, %s25, [#allocation3]
    $region5: #{tpu_custom_call.1} parent=1 // pred_fallthru
      _
    // Predicated region
    $region6: #{tpu_custom_call.1} parent=1 // pred_check
      _
    $region7: #{tpu_custom_call.1} parent=1 // pred_check_branch
      %29 = sbr.rel (0) target = $region9
    $region8: #{tpu_custom_call.1} parent=1 // pred_region
      %s31 = ssub.s32 256, 256
      %32 = vsyncadd [#allocation6], %s31
      %s33 = sshll.u32 [#allocation5], 4
      %s34 = int_to_ptr.vmem [resolvable:$true] %s33
      %39 = dma.hbm_to_vmem [thread:$0]  %s1, 256, %s34, [#allocation6], 128, 128, 8
    $region9: #{tpu_custom_call.1} parent=1 // pred_fallthru
      _
    // Predicated region
    $region10: #{tpu_custom_call.1} parent=1 // pred_check
      _
    $region11: #{tpu_custom_call.1} parent=1 // pred_check_branch
      %41 = sbr.rel (0) target = $region13
    $region12: #{tpu_custom_call.1} parent=1 // pred_region
      _
    $region13: #{tpu_custom_call.1} parent=1 // pred_fallthru
      _
    // Predicated region
    $region14: #{tpu_custom_call.1} parent=1 // pred_check
      _
    $region15: #{tpu_custom_call.1} parent=1 // pred_check_branch
      %43 = sbr.rel (0) target = $region17
    $region16: #{tpu_custom_call.1} parent=1 // pred_region
      _
    $region17: #{tpu_custom_call.1} parent=1 // pred_fallthru
      _
    // Predicated region
    $region18: #{tpu_custom_call.1} parent=1 // pred_check
      _
    $region19: #{tpu_custom_call.1} parent=1 // pred_check_branch
      %45 = sbr.rel (0) target = $region21
    $region20: #{tpu_custom_call.1} parent=1 // pred_region
      _
    $region21: #{tpu_custom_call.1} parent=1 // pred_fallthru
      _
    // Predicated region
    $region22: #{tpu_custom_call.1} parent=1 // pred_check
      _
    $region23: #{tpu_custom_call.1} parent=1 // pred_check_branch
      %47 = sbr.rel (0) target = $region25
    $region24: #{tpu_custom_call.1} parent=1 // pred_region
      _
    $region25: #{tpu_custom_call.1} parent=1 // pred_fallthru
      _
    // Predicated region
    $region26: #{tpu_custom_call.1} parent=1 // pred_check
      _
    $region27: #{tpu_custom_call.1} parent=1 // pred_check_branch
      %49 = sbr.rel (0) target = $region29
    $region28: #{tpu_custom_call.1} parent=1 // pred_region
      _
    $region29: #{tpu_custom_call.1} parent=1 // pred_fallthru
      _
    // Predicated region
    $region30: #{tpu_custom_call.1} parent=1 // pred_check
      _
    $region31: #{tpu_custom_call.1} parent=1 // pred_check_branch
      %51 = sbr.rel (0) target = $region33
    $region32: #{tpu_custom_call.1} parent=1 // pred_region
      _
    $region33: #{tpu_custom_call.1} parent=1 // pred_fallthru
      _
    // Predicated region
    $region34: #{tpu_custom_call.1} parent=1 // pred_check
      _
    $region35: #{tpu_custom_call.1} parent=1 // pred_check_branch
      %53 = sbr.rel (0) target = $region37
    $region36: #{tpu_custom_call.1} parent=1 // pred_region
      _
    $region37: #{tpu_custom_call.1} parent=1 // pred_fallthru
      _
    // Predicated region
    $region38: #{tpu_custom_call.1} parent=1 // pred_check
      _
    $region39: #{tpu_custom_call.1} parent=1 // pred_check_branch
      %55 = sbr.rel (0) target = $region41
    $region40: #{tpu_custom_call.1} parent=1 // pred_region
      _
    $region41: #{tpu_custom_call.1} parent=1 // pred_fallthru
      _
    // Predicated region
    $region42: #{tpu_custom_call.1} parent=1 // pred_check
      _
    $region43: #{tpu_custom_call.1} parent=1 // pred_check_branch
      %57 = sbr.rel (0) target = $region45
    $region44: #{tpu_custom_call.1} parent=1 // pred_region
      %58 = dma.done [#allocation3], 128
    $region45: #{tpu_custom_call.1} parent=1 // pred_fallthru
      _
    // Predicated region
    $region46: #{tpu_custom_call.1} parent=1 // pred_check
      _
    $region47: #{tpu_custom_call.1} parent=1 // pred_check_branch
      %60 = sbr.rel (0) target = $region49
    $region48: #{tpu_custom_call.1} parent=1 // pred_region
      %61 = dma.done [#allocation6], 256
    $region49: #{tpu_custom_call.1} parent=1 // pred_fallthru
      _
    %v62 = vld [vmem:[#allocation2] sm:$0xff]
    %v63 = vld [vmem:[#allocation5] sm:$0xff]
    %v64 = vld [vmem:[#allocation5 + $0x8] sm:$0xff]
    %v65 = vld [vmem:[%s2] sm:$0xff]
    %v66 = vld [vmem:[%s2 + $0x8] sm:$0xff]
    %v67 = vld [vmem:[%s2 + $0x10] sm:$0xff]
    %v68 = vld [vmem:[%s2 + $0x18] sm:$0xff]
    %v69 = vld [vmem:[%s3] sm:$0x1]
    %v70 = vld [vmem:[%s4] sm:$0xff]
    %v71 = vld [vmem:[%s4 + $0x8] sm:$0xff]
    %v72 = vld [vmem:[%s4 + $0x10] sm:$0xff]
    %v73 = vld [vmem:[%s4 + $0x18] sm:$0xff]
    %v74 = vld [vmem:[%s5] sm:$0xff]
    %v75 = vld [vmem:[%s5 + $0x8] sm:$0xff]
    %v76 = vld [vmem:[%s5 + $0x10] sm:$0xff]
    %v77 = vld [vmem:[%s5 + $0x18] sm:$0xff]
    %v78 = vld [vmem:[%s5 + $0x20] sm:$0xff]
    %v79 = vld [vmem:[%s5 + $0x28] sm:$0xff]
    %v80 = vld [vmem:[%s5 + $0x30] sm:$0xff]
    %v81 = vld [vmem:[%s5 + $0x38] sm:$0xff]
    %v83 = vlaneseq
    %v84 = vshrl.u32 %v83, 7
    %v85 = vsub.s32 0, %v84
    %v86 = vrot.slane %v69, %v85
    %vm88 = vcmask 130048
    %v90 = vsel %vm88, %v62, 0
    %92 = vmatprep.subr.mxu0 0.0
    %93 = vmatpush1.msra.mxu0 0.0
    %94 = vmatprep.subr.mxu0 0.0
    %95 = vmatpush1.msra.mxu0 0.0
    %96 = vmatprep.subr.mxu0 0.0
    %97 = vmatpush1.msra.mxu0 0.0
    %98 = vmatprep.subr.mxu0 0.0
    %99 = vmatpush1.msra.mxu0 0.0
    %100 = vmatprep.subr.mxu0 0.0
    %101 = vmatpush1.msra.mxu0 0.0
    %102 = vmatprep.subr.mxu0 0.0
    %103 = vmatpush1.msra.mxu0 0.0
    %104 = vmatprep.subr.mxu0 0.0
    %105 = vmatpush1.msra.mxu0 0.0
    %106 = vmatprep.subr.mxu0 0.0
    %107 = vmatpush1.msra.mxu0 0.0
    %108 = vmatprep.subr.mxu0 0.0
    %109 = vmatpush1.msra.mxu0 0.0
    %110 = vmatprep.subr.mxu0 0.0
    %111 = vmatpush1.msra.mxu0 0.0
    %112 = vmatprep.subr.mxu0 0.0
    %113 = vmatpush1.msra.mxu0 0.0
    %114 = vmatprep.subr.mxu0 0.0
    %115 = vmatpush1.msra.mxu0 0.0
    %116 = vmatprep.subr.mxu0 0.0
    %117 = vmatpush1.msra.mxu0 0.0
    %118 = vmatprep.subr.mxu0 0.0
    %119 = vmatpush1.msra.mxu0 0.0
    %120 = vmatprep.subr.mxu0 0.0
    %121 = vmatpush1.msra.mxu0 %v64
    %122 = vmatprep.subr.mxu0 0.0
    %123 = vmatpush1.msra.mxu0 %v63
    %124 = vmatprep.subr.mxu0 0.0
    %125 = vmatpush2.msra.mxu0 0.0
    %126 = vmatprep.subr.mxu0 0.0
    %127 = vmatpush2.msra.mxu0 0.0
    %128 = vmatprep.subr.mxu0 0.0
    %129 = vmatpush2.msra.mxu0 0.0
    %130 = vmatprep.subr.mxu0 0.0
    %131 = vmatpush2.msra.mxu0 0.0
    %132 = vmatprep.subr.mxu0 0.0
    %133 = vmatpush2.msra.mxu0 0.0
    %134 = vmatprep.subr.mxu0 0.0
    %135 = vmatpush2.msra.mxu0 0.0
    %136 = vmatprep.subr.mxu0 0.0
    %137 = vmatpush2.msra.mxu0 0.0
    %138 = vmatprep.subr.mxu0 0.0
    %139 = vmatpush2.msra.mxu0 0.0
    %140 = vmatprep.subr.mxu0 0.0
    %141 = vmatpush2.msra.mxu0 0.0
    %142 = vmatprep.subr.mxu0 0.0
    %143 = vmatpush2.msra.mxu0 0.0
    %144 = vmatprep.subr.mxu0 0.0
    %145 = vmatpush2.msra.mxu0 0.0
    %146 = vmatprep.subr.mxu0 0.0
    %147 = vmatpush2.msra.mxu0 0.0
    %148 = vmatprep.subr.mxu0 0.0
    %149 = vmatpush2.msra.mxu0 0.0
    %150 = vmatprep.subr.mxu0 0.0
    %151 = vmatpush2.msra.mxu0 0.0
    %152 = vmatprep.subr.mxu0 0.0
    %153 = vmatpush2.msra.mxu0 0.0
    %154 = vmatprep.subr.mxu0 0.0
    %155 = vmatpush2.msra.mxu0 0.0
    %156 = vmatprep.mubr.f32.mxu0 0.0
    %157 = vmatmul.mubr.f32.gmra.mxu0 %v90
    %v158 = vpop.f32.mrf.mxu0
    %v159 = vadd.f32 %v86, %v158
    %v160 = vpop.f32.mrf.mxu0
    %161 = vdwg.mxu0
    %vm162 = vcmask 261120
    %v164 = vsel %vm162, 0.0, 0
    %166 = vmatprep.subr.mxu0 0.0
    %167 = vmatpush1.msra.mxu0 0.0
    %168 = vmatprep.subr.mxu0 0.0
    %169 = vmatpush1.msra.mxu0 0.0
    %170 = vmatprep.subr.mxu0 0.0
    %171 = vmatpush1.msra.mxu0 0.0
    %172 = vmatprep.subr.mxu0 0.0
    %173 = vmatpush1.msra.mxu0 0.0
    %174 = vmatprep.subr.mxu0 0.0
    %175 = vmatpush1.msra.mxu0 0.0
    %176 = vmatprep.subr.mxu0 0.0
    %177 = vmatpush1.msra.mxu0 0.0
    %178 = vmatprep.subr.mxu0 0.0
    %179 = vmatpush1.msra.mxu0 0.0
    %180 = vmatprep.subr.mxu0 0.0
    %181 = vmatpush1.msra.mxu0 0.0
    %182 = vmatprep.subr.mxu0 0.0
    %183 = vmatpush1.msra.mxu0 0.0
    %184 = vmatprep.subr.mxu0 0.0
    %185 = vmatpush1.msra.mxu0 0.0
    %186 = vmatprep.subr.mxu0 0.0
    %187 = vmatpush1.msra.mxu0 0.0
    %188 = vmatprep.subr.mxu0 0.0
    %189 = vmatpush1.msra.mxu0 0.0
    %190 = vmatprep.subr.mxu0 0.0
    %191 = vmatpush1.msra.mxu0 %v68
    %192 = vmatprep.subr.mxu0 0.0
    %193 = vmatpush1.msra.mxu0 %v67
    %194 = vmatprep.subr.mxu0 0.0
    %195 = vmatpush1.msra.mxu0 %v66
    %196 = vmatprep.subr.mxu0 0.0
    %197 = vmatpush1.msra.mxu0 %v65
    %198 = vmatprep.subr.mxu0 0.0
    %199 = vmatpush2.msra.mxu0 0.0
    %200 = vmatprep.subr.mxu0 0.0
    %201 = vmatpush2.msra.mxu0 0.0
    %202 = vmatprep.subr.mxu0 0.0
    %203 = vmatpush2.msra.mxu0 0.0
    %204 = vmatprep.subr.mxu0 0.0
    %205 = vmatpush2.msra.mxu0 0.0
    %206 = vmatprep.subr.mxu0 0.0
    %207 = vmatpush2.msra.mxu0 0.0
    %208 = vmatprep.subr.mxu0 0.0
    %209 = vmatpush2.msra.mxu0 0.0
    %210 = vmatprep.subr.mxu0 0.0
    %211 = vmatpush2.msra.mxu0 0.0
    %212 = vmatprep.subr.mxu0 0.0
    %213 = vmatpush2.msra.mxu0 0.0
    %214 = vmatprep.subr.mxu0 0.0
    %215 = vmatpush2.msra.mxu0 0.0
    %216 = vmatprep.subr.mxu0 0.0
    %217 = vmatpush2.msra.mxu0 0.0
    %218 = vmatprep.subr.mxu0 0.0
    %219 = vmatpush2.msra.mxu0 0.0
    %220 = vmatprep.subr.mxu0 0.0
    %221 = vmatpush2.msra.mxu0 0.0
    %222 = vmatprep.subr.mxu0 0.0
    %223 = vmatpush2.msra.mxu0 0.0
    %224 = vmatprep.subr.mxu0 0.0
    %225 = vmatpush2.msra.mxu0 0.0
    %226 = vmatprep.subr.mxu0 0.0
    %227 = vmatpush2.msra.mxu0 0.0
    %228 = vmatprep.subr.mxu0 0.0
    %229 = vmatpush2.msra.mxu0 0.0
    %230 = vmatprep.mubr.f32.mxu0 0.0
    %231 = vmatmul.mubr.f32.gmra.mxu0 %v164
    %v232 = vpop.f32.mrf.mxu0
    %v233 = vadd.f32 0.0, %v232
    %v234 = vpop.f32.mrf.mxu0
    %235 = vdwg.mxu0
    %v236 = vadd.f32 %v159, %v233
    %v237 = vtanh.pop %v236
    %v238 = vxor.u32 %v236, 2147483648
    %v239 = vmul.f32 %v238, 1.442695
    %v240 = vpow.pop %v239
    %v241 = vadd.f32 %v240, 1.0
    %v242 = vrcp.pop %v241
    %v243 = vmul.f32 1.0, %v242
    %v244 = vadd.f32 %v236, 0.0
    %246 = vrot.lane.b32.xlu0 %v236, 32
    %v247 = vpop.permute.xlu0 %246
    %v249 = vmax.f32 %v244, %v247
    %251 = vrot.lane.b32.xlu0 %v249, 96
    %v252 = vpop.permute.xlu0 %251
    %v254 = vsub.f32 %v236, %v252
    %v255 = vmul.f32 %v254, 1.442695
    %v256 = vpow.pop %v255
    %v257 = vsub.f32 %v244, %v249
    %v258 = vmul.f32 %v257, 1.442695
    %v259 = vpow.pop %v258
    %v260 = vmul.f32 %v259, 0.0
    %262 = vrot.lane.b32.xlu0 %v237, 64
    %v263 = vpop.permute.xlu0 %262
    %v265 = vmul.f32 %v256, %v263
    %267 = vrot.lane.b32.xlu0 %v265, 32
    %v268 = vpop.permute.xlu0 %267
    %v270 = vadd.f32 %v260, %v268
    %272 = vrot.lane.b32.xlu0 %v256, 32
    %v273 = vpop.permute.xlu0 %272
    %v275 = vadd.f32 %v260, %v273
    %277 = vrot.lane.b32.xlu0 %v270, 64
    %v278 = vpop.permute.xlu0 %277
    %v280 = vmul.f32 %v243, %v278
    %v281 = vand.u32 2147483647, %v275
    %v282 = vmax.f32 %v281, 1e-06
    %284 = vrot.lane.b32.xlu0 %v282, 64
    %v285 = vpop.permute.xlu0 %284
    %v287 = vrcp.pop %v285
    %v288 = vmul.f32 %v280, %v287
    %290 = vrot.lane.b32.xlu0 %v288, 32
    %v291 = vpop.permute.xlu0 %290
    %v292 = vsel %vm162, %v291, 0
    %294 = vmatprep.subr.mxu0 0.0
    %295 = vmatpush1.msra.mxu0 0.0
    %296 = vmatprep.subr.mxu0 0.0
    %297 = vmatpush1.msra.mxu0 0.0
    %298 = vmatprep.subr.mxu0 0.0
    %299 = vmatpush1.msra.mxu0 0.0
    %300 = vmatprep.subr.mxu0 0.0
    %301 = vmatpush1.msra.mxu0 0.0
    %302 = vmatprep.subr.mxu0 0.0
    %303 = vmatpush1.msra.mxu0 0.0
    %304 = vmatprep.subr.mxu0 0.0
    %305 = vmatpush1.msra.mxu0 0.0
    %306 = vmatprep.subr.mxu0 0.0
    %307 = vmatpush1.msra.mxu0 0.0
    %308 = vmatprep.subr.mxu0 0.0
    %309 = vmatpush1.msra.mxu0 0.0
    %310 = vmatprep.subr.mxu0 0.0
    %311 = vmatpush1.msra.mxu0 0.0
    %312 = vmatprep.subr.mxu0 0.0
    %313 = vmatpush1.msra.mxu0 0.0
    %314 = vmatprep.subr.mxu0 0.0
    %315 = vmatpush1.msra.mxu0 0.0
    %316 = vmatprep.subr.mxu0 0.0
    %317 = vmatpush1.msra.mxu0 0.0
    %318 = vmatprep.subr.mxu0 0.0
    %319 = vmatpush1.msra.mxu0 %v68
    %320 = vmatprep.subr.mxu0 0.0
    %321 = vmatpush1.msra.mxu0 %v67
    %322 = vmatprep.subr.mxu0 0.0
    %323 = vmatpush1.msra.mxu0 %v66
    %324 = vmatprep.subr.mxu0 0.0
    %325 = vmatpush1.msra.mxu0 %v65
    %326 = vmatprep.subr.mxu0 0.0
    %327 = vmatpush2.msra.mxu0 0.0
    %328 = vmatprep.subr.mxu0 0.0
    %329 = vmatpush2.msra.mxu0 0.0
    %330 = vmatprep.subr.mxu0 0.0
    %331 = vmatpush2.msra.mxu0 0.0
    %332 = vmatprep.subr.mxu0 0.0
    %333 = vmatpush2.msra.mxu0 0.0
    %334 = vmatprep.subr.mxu0 0.0
    %335 = vmatpush2.msra.mxu0 0.0
    %336 = vmatprep.subr.mxu0 0.0
    %337 = vmatpush2.msra.mxu0 0.0
    %338 = vmatprep.subr.mxu0 0.0
    %339 = vmatpush2.msra.mxu0 0.0
    %340 = vmatprep.subr.mxu0 0.0
    %341 = vmatpush2.msra.mxu0 0.0
    %342 = vmatprep.subr.mxu0 0.0
    %343 = vmatpush2.msra.mxu0 0.0
    %344 = vmatprep.subr.mxu0 0.0
    %345 = vmatpush2.msra.mxu0 0.0
    %346 = vmatprep.subr.mxu0 0.0
    %347 = vmatpush2.msra.mxu0 0.0
    %348 = vmatprep.subr.mxu0 0.0
    %349 = vmatpush2.msra.mxu0 0.0
    %350 = vmatprep.subr.mxu0 0.0
    %351 = vmatpush2.msra.mxu0 0.0
    %352 = vmatprep.subr.mxu0 0.0
    %353 = vmatpush2.msra.mxu0 0.0
    %354 = vmatprep.subr.mxu0 0.0
    %355 = vmatpush2.msra.mxu0 0.0
    %356 = vmatprep.subr.mxu0 0.0
    %357 = vmatpush2.msra.mxu0 0.0
    %358 = vmatprep.mubr.f32.mxu0 0.0
    %359 = vmatmul.mubr.f32.gmra.mxu0 %v292
    %v360 = vpop.f32.mrf.mxu0
    %v361 = vadd.f32 0.0, %v360
    %v362 = vpop.f32.mrf.mxu0
    %363 = vdwg.mxu0
    %v365 = vrot.slane %v361, 7
    %v367 = vadd.f32 %v159, %v365
    %v368 = vtanh.pop %v367
    %v369 = vxor.u32 %v367, 2147483648
    %v370 = vmul.f32 %v369, 1.442695
    %v371 = vpow.pop %v370
    %v372 = vadd.f32 %v371, 1.0
    %v373 = vrcp.pop %v372
    %v374 = vmul.f32 1.0, %v373
    %v375 = vrot.slane %v249, 7
    %v377 = vadd.f32 %v367, %v375
    %379 = vrot.lane.b32.xlu0 %v367, 32
    %v380 = vpop.permute.xlu0 %379
    %v382 = vmax.f32 %v377, %v380
    %384 = vrot.lane.b32.xlu0 %v382, 96
    %v385 = vpop.permute.xlu0 %384
    %v387 = vsub.f32 %v367, %v385
    %v388 = vmul.f32 %v387, 1.442695
    %v389 = vpow.pop %v388
    %v390 = vsub.f32 %v377, %v382
    %v391 = vmul.f32 %v390, 1.442695
    %v392 = vpow.pop %v391
    %v393 = vrot.slane %v270, 7
    %v395 = vmul.f32 %v392, %v393
    %397 = vrot.lane.b32.xlu0 %v368, 64
    %v398 = vpop.permute.xlu0 %397
    %v400 = vmul.f32 %v389, %v398
    %402 = vrot.lane.b32.xlu0 %v400, 32
    %v403 = vpop.permute.xlu0 %402
    %v405 = vadd.f32 %v395, %v403
    %v407 = vrot.slane %v275, 7
    %v409 = vmul.f32 %v392, %v407
    %411 = vrot.lane.b32.xlu0 %v389, 32
    %v412 = vpop.permute.xlu0 %411
    %v414 = vadd.f32 %v409, %v412
    %416 = vrot.lane.b32.xlu0 %v405, 64
    %v417 = vpop.permute.xlu0 %416
    %v419 = vmul.f32 %v374, %v417
    %v420 = vand.u32 2147483647, %v414
    %v421 = vmax.f32 %v420, 1e-06
    %423 = vrot.lane.b32.xlu0 %v421, 64
    %v424 = vpop.permute.xlu0 %423
    %v426 = vrcp.pop %v424
    %v427 = vmul.f32 %v419, %v426
    %v429 = vrot.slane %v427, 1
    %430 = vrot.lane.b32.xlu0 %v429, 32
    %v431 = vpop.permute.xlu0 %430
    %v432 = vsel %vm162, %v431, 0
    %434 = vmatprep.subr.mxu0 0.0
    %435 = vmatpush1.msra.mxu0 0.0
    %436 = vmatprep.subr.mxu0 0.0
    %437 = vmatpush1.msra.mxu0 0.0
    %438 = vmatprep.subr.mxu0 0.0
    %439 = vmatpush1.msra.mxu0 0.0
    %440 = vmatprep.subr.mxu0 0.0
    %441 = vmatpush1.msra.mxu0 0.0
    %442 = vmatprep.subr.mxu0 0.0
    %443 = vmatpush1.msra.mxu0 0.0
    %444 = vmatprep.subr.mxu0 0.0
    %445 = vmatpush1.msra.mxu0 0.0
    %446 = vmatprep.subr.mxu0 0.0
    %447 = vmatpush1.msra.mxu0 0.0
    %448 = vmatprep.subr.mxu0 0.0
    %449 = vmatpush1.msra.mxu0 0.0
    %450 = vmatprep.subr.mxu0 0.0
    %451 = vmatpush1.msra.mxu0 0.0
    %452 = vmatprep.subr.mxu0 0.0
    %453 = vmatpush1.msra.mxu0 0.0
    %454 = vmatprep.subr.mxu0 0.0
    %455 = vmatpush1.msra.mxu0 0.0
    %456 = vmatprep.subr.mxu0 0.0
    %457 = vmatpush1.msra.mxu0 0.0
    %458 = vmatprep.subr.mxu0 0.0
    %459 = vmatpush1.msra.mxu0 %v68
    %460 = vmatprep.subr.mxu0 0.0
    %461 = vmatpush1.msra.mxu0 %v67
    %462 = vmatprep.subr.mxu0 0.0
    %463 = vmatpush1.msra.mxu0 %v66
    %464 = vmatprep.subr.mxu0 0.0
    %465 = vmatpush1.msra.mxu0 %v65
    %466 = vmatprep.subr.mxu0 0.0
    %467 = vmatpush2.msra.mxu0 0.0
    %468 = vmatprep.subr.mxu0 0.0
    %469 = vmatpush2.msra.mxu0 0.0
    %470 = vmatprep.subr.mxu0 0.0
    %471 = vmatpush2.msra.mxu0 0.0
    %472 = vmatprep.subr.mxu0 0.0
    %473 = vmatpush2.msra.mxu0 0.0
    %474 = vmatprep.subr.mxu0 0.0
    %475 = vmatpush2.msra.mxu0 0.0
    %476 = vmatprep.subr.mxu0 0.0
    %477 = vmatpush2.msra.mxu0 0.0
    %478 = vmatprep.subr.mxu0 0.0
    %479 = vmatpush2.msra.mxu0 0.0
    %480 = vmatprep.subr.mxu0 0.0
    %481 = vmatpush2.msra.mxu0 0.0
    %482 = vmatprep.subr.mxu0 0.0
    %483 = vmatpush2.msra.mxu0 0.0
    %484 = vmatprep.subr.mxu0 0.0
    %485 = vmatpush2.msra.mxu0 0.0
    %486 = vmatprep.subr.mxu0 0.0
    %487 = vmatpush2.msra.mxu0 0.0
    %488 = vmatprep.subr.mxu0 0.0
    %489 = vmatpush2.msra.mxu0 0.0
    %490 = vmatprep.subr.mxu0 0.0
    %491 = vmatpush2.msra.mxu0 0.0
    %492 = vmatprep.subr.mxu0 0.0
    %493 = vmatpush2.msra.mxu0 0.0
    %494 = vmatprep.subr.mxu0 0.0
    %495 = vmatpush2.msra.mxu0 0.0
    %496 = vmatprep.subr.mxu0 0.0
    %497 = vmatpush2.msra.mxu0 0.0
    %498 = vmatprep.mubr.f32.mxu0 0.0
    %499 = vmatmul.mubr.f32.gmra.mxu0 %v432
    %v500 = vpop.f32.mrf.mxu0
    %v501 = vadd.f32 0.0, %v500
    %v502 = vpop.f32.mrf.mxu0
    %503 = vdwg.mxu0
    %v505 = vrot.slane %v501, 6
    %v507 = vadd.f32 %v159, %v505
    %v508 = vtanh.pop %v507
    %v509 = vxor.u32 %v507, 2147483648
    %v510 = vmul.f32 %v509, 1.442695
    %v511 = vpow.pop %v510
    %v512 = vadd.f32 %v511, 1.0
    %v513 = vrcp.pop %v512
    %v514 = vmul.f32 1.0, %v513
    %v515 = vrot.slane %v382, 7
    %v517 = vadd.f32 %v507, %v515
    %519 = vrot.lane.b32.xlu0 %v507, 32
    %v520 = vpop.permute.xlu0 %519
    %v522 = vmax.f32 %v517, %v520
    %524 = vrot.lane.b32.xlu0 %v522, 96
    %v525 = vpop.permute.xlu0 %524
    %v527 = vsub.f32 %v507, %v525
    %v528 = vmul.f32 %v527, 1.442695
    %v529 = vpow.pop %v528
    %v530 = vsub.f32 %v517, %v522
    %v531 = vmul.f32 %v530, 1.442695
    %v532 = vpow.pop %v531
    %v533 = vrot.slane %v405, 7
    %v535 = vmul.f32 %v532, %v533
    %537 = vrot.lane.b32.xlu0 %v508, 64
    %v538 = vpop.permute.xlu0 %537
    %v540 = vmul.f32 %v529, %v538
    %542 = vrot.lane.b32.xlu0 %v540, 32
    %v543 = vpop.permute.xlu0 %542
    %v545 = vadd.f32 %v535, %v543
    %v547 = vrot.slane %v414, 7
    %v549 = vmul.f32 %v532, %v547
    %551 = vrot.lane.b32.xlu0 %v529, 32
    %v552 = vpop.permute.xlu0 %551
    %v554 = vadd.f32 %v549, %v552
    %556 = vrot.lane.b32.xlu0 %v545, 64
    %v557 = vpop.permute.xlu0 %556
    %v559 = vmul.f32 %v514, %v557
    %v560 = vand.u32 2147483647, %v554
    %v561 = vmax.f32 %v560, 1e-06
    %563 = vrot.lane.b32.xlu0 %v561, 64
    %v564 = vpop.permute.xlu0 %563
    %v566 = vrcp.pop %v564
    %v567 = vmul.f32 %v559, %v566
    %v569 = vrot.slane %v567, 2
    %570 = vrot.lane.b32.xlu0 %v569, 32
    %v571 = vpop.permute.xlu0 %570
    %v572 = vsel %vm162, %v571, 0
    %574 = vmatprep.subr.mxu0 0.0
    %575 = vmatpush1.msra.mxu0 0.0
    %576 = vmatprep.subr.mxu0 0.0
    %577 = vmatpush1.msra.mxu0 0.0
    %578 = vmatprep.subr.mxu0 0.0
    %579 = vmatpush1.msra.mxu0 0.0
    %580 = vmatprep.subr.mxu0 0.0
    %581 = vmatpush1.msra.mxu0 0.0
    %582 = vmatprep.subr.mxu0 0.0
    %583 = vmatpush1.msra.mxu0 0.0
    %584 = vmatprep.subr.mxu0 0.0
    %585 = vmatpush1.msra.mxu0 0.0
    %586 = vmatprep.subr.mxu0 0.0
    %587 = vmatpush1.msra.mxu0 0.0
    %588 = vmatprep.subr.mxu0 0.0
    %589 = vmatpush1.msra.mxu0 0.0
    %590 = vmatprep.subr.mxu0 0.0
    %591 = vmatpush1.msra.mxu0 0.0
    %592 = vmatprep.subr.mxu0 0.0
    %593 = vmatpush1.msra.mxu0 0.0
    %594 = vmatprep.subr.mxu0 0.0
    %595 = vmatpush1.msra.mxu0 0.0
    %596 = vmatprep.subr.mxu0 0.0
    %597 = vmatpush1.msra.mxu0 0.0
    %598 = vmatprep.subr.mxu0 0.0
    %599 = vmatpush1.msra.mxu0 %v68
    %600 = vmatprep.subr.mxu0 0.0
    %601 = vmatpush1.msra.mxu0 %v67
    %602 = vmatprep.subr.mxu0 0.0
    %603 = vmatpush1.msra.mxu0 %v66
    %604 = vmatprep.subr.mxu0 0.0
    %605 = vmatpush1.msra.mxu0 %v65
    %606 = vmatprep.subr.mxu0 0.0
    %607 = vmatpush2.msra.mxu0 0.0
    %608 = vmatprep.subr.mxu0 0.0
    %609 = vmatpush2.msra.mxu0 0.0
    %610 = vmatprep.subr.mxu0 0.0
    %611 = vmatpush2.msra.mxu0 0.0
    %612 = vmatprep.subr.mxu0 0.0
    %613 = vmatpush2.msra.mxu0 0.0
    %614 = vmatprep.subr.mxu0 0.0
    %615 = vmatpush2.msra.mxu0 0.0
    %616 = vmatprep.subr.mxu0 0.0
    %617 = vmatpush2.msra.mxu0 0.0
    %618 = vmatprep.subr.mxu0 0.0
    %619 = vmatpush2.msra.mxu0 0.0
    %620 = vmatprep.subr.mxu0 0.0
    %621 = vmatpush2.msra.mxu0 0.0
    %622 = vmatprep.subr.mxu0 0.0
    %623 = vmatpush2.msra.mxu0 0.0
    %624 = vmatprep.subr.mxu0 0.0
    %625 = vmatpush2.msra.mxu0 0.0
    %626 = vmatprep.subr.mxu0 0.0
    %627 = vmatpush2.msra.mxu0 0.0
    %628 = vmatprep.subr.mxu0 0.0
    %629 = vmatpush2.msra.mxu0 0.0
    %630 = vmatprep.subr.mxu0 0.0
    %631 = vmatpush2.msra.mxu0 0.0
    %632 = vmatprep.subr.mxu0 0.0
    %633 = vmatpush2.msra.mxu0 0.0
    %634 = vmatprep.subr.mxu0 0.0
    %635 = vmatpush2.msra.mxu0 0.0
    %636 = vmatprep.subr.mxu0 0.0
    %637 = vmatpush2.msra.mxu0 0.0
    %638 = vmatprep.mubr.f32.mxu0 0.0
    %639 = vmatmul.mubr.f32.gmra.mxu0 %v572
    %v640 = vpop.f32.mrf.mxu0
    %v641 = vadd.f32 0.0, %v640
    %v642 = vpop.f32.mrf.mxu0
    %643 = vdwg.mxu0
    %v645 = vrot.slane %v641, 5
    %v647 = vadd.f32 %v159, %v645
    %v648 = vtanh.pop %v647
    %v649 = vxor.u32 %v647, 2147483648
    %v650 = vmul.f32 %v649, 1.442695
    %v651 = vpow.pop %v650
    %v652 = vadd.f32 %v651, 1.0
    %v653 = vrcp.pop %v652
    %v654 = vmul.f32 1.0, %v653
    %v655 = vrot.slane %v522, 7
    %v657 = vadd.f32 %v647, %v655
    %659 = vrot.lane.b32.xlu0 %v647, 32
    %v660 = vpop.permute.xlu0 %659
    %v662 = vmax.f32 %v657, %v660
    %664 = vrot.lane.b32.xlu0 %v662, 96
    %v665 = vpop.permute.xlu0 %664
    %v667 = vsub.f32 %v647, %v665
    %v668 = vmul.f32 %v667, 1.442695
    %v669 = vpow.pop %v668
    %v670 = vsub.f32 %v657, %v662
    %v671 = vmul.f32 %v670, 1.442695
    %v672 = vpow.pop %v671
    %v673 = vrot.slane %v545, 7
    %v675 = vmul.f32 %v672, %v673
    %677 = vrot.lane.b32.xlu0 %v648, 64
    %v678 = vpop.permute.xlu0 %677
    %v680 = vmul.f32 %v669, %v678
    %682 = vrot.lane.b32.xlu0 %v680, 32
    %v683 = vpop.permute.xlu0 %682
    %v685 = vadd.f32 %v675, %v683
    %v687 = vrot.slane %v554, 7
    %v689 = vmul.f32 %v672, %v687
    %691 = vrot.lane.b32.xlu0 %v669, 32
    %v692 = vpop.permute.xlu0 %691
    %v694 = vadd.f32 %v689, %v692
    %696 = vrot.lane.b32.xlu0 %v685, 64
    %v697 = vpop.permute.xlu0 %696
    %v699 = vmul.f32 %v654, %v697
    %v700 = vand.u32 2147483647, %v694
    %v701 = vmax.f32 %v700, 1e-06
    %703 = vrot.lane.b32.xlu0 %v701, 64
    %v704 = vpop.permute.xlu0 %703
    %v706 = vrcp.pop %v704
    %v707 = vmul.f32 %v699, %v706
    %v709 = vrot.slane %v707, 3
    %710 = vrot.lane.b32.xlu0 %v709, 32
    %v711 = vpop.permute.xlu0 %710
    %v712 = vsel %vm162, %v711, 0
    %714 = vmatprep.subr.mxu0 0.0
    %715 = vmatpush1.msra.mxu0 0.0
    %716 = vmatprep.subr.mxu0 0.0
    %717 = vmatpush1.msra.mxu0 0.0
    %718 = vmatprep.subr.mxu0 0.0
    %719 = vmatpush1.msra.mxu0 0.0
    %720 = vmatprep.subr.mxu0 0.0
    %721 = vmatpush1.msra.mxu0 0.0
    %722 = vmatprep.subr.mxu0 0.0
    %723 = vmatpush1.msra.mxu0 0.0
    %724 = vmatprep.subr.mxu0 0.0
    %725 = vmatpush1.msra.mxu0 0.0
    %726 = vmatprep.subr.mxu0 0.0
    %727 = vmatpush1.msra.mxu0 0.0
    %728 = vmatprep.subr.mxu0 0.0
    %729 = vmatpush1.msra.mxu0 0.0
    %730 = vmatprep.subr.mxu0 0.0
    %731 = vmatpush1.msra.mxu0 0.0
    %732 = vmatprep.subr.mxu0 0.0
    %733 = vmatpush1.msra.mxu0 0.0
    %734 = vmatprep.subr.mxu0 0.0
    %735 = vmatpush1.msra.mxu0 0.0
    %736 = vmatprep.subr.mxu0 0.0
    %737 = vmatpush1.msra.mxu0 0.0
    %738 = vmatprep.subr.mxu0 0.0
    %739 = vmatpush1.msra.mxu0 %v68
    %740 = vmatprep.subr.mxu0 0.0
    %741 = vmatpush1.msra.mxu0 %v67
    %742 = vmatprep.subr.mxu0 0.0
    %743 = vmatpush1.msra.mxu0 %v66
    %744 = vmatprep.subr.mxu0 0.0
    %745 = vmatpush1.msra.mxu0 %v65
    %746 = vmatprep.subr.mxu0 0.0
    %747 = vmatpush2.msra.mxu0 0.0
    %748 = vmatprep.subr.mxu0 0.0
    %749 = vmatpush2.msra.mxu0 0.0
    %750 = vmatprep.subr.mxu0 0.0
    %751 = vmatpush2.msra.mxu0 0.0
    %752 = vmatprep.subr.mxu0 0.0
    %753 = vmatpush2.msra.mxu0 0.0
    %754 = vmatprep.subr.mxu0 0.0
    %755 = vmatpush2.msra.mxu0 0.0
    %756 = vmatprep.subr.mxu0 0.0
    %757 = vmatpush2.msra.mxu0 0.0
    %758 = vmatprep.subr.mxu0 0.0
    %759 = vmatpush2.msra.mxu0 0.0
    %760 = vmatprep.subr.mxu0 0.0
    %761 = vmatpush2.msra.mxu0 0.0
    %762 = vmatprep.subr.mxu0 0.0
    %763 = vmatpush2.msra.mxu0 0.0
    %764 = vmatprep.subr.mxu0 0.0
    %765 = vmatpush2.msra.mxu0 0.0
    %766 = vmatprep.subr.mxu0 0.0
    %767 = vmatpush2.msra.mxu0 0.0
    %768 = vmatprep.subr.mxu0 0.0
    %769 = vmatpush2.msra.mxu0 0.0
    %770 = vmatprep.subr.mxu0 0.0
    %771 = vmatpush2.msra.mxu0 0.0
    %772 = vmatprep.subr.mxu0 0.0
    %773 = vmatpush2.msra.mxu0 0.0
    %774 = vmatprep.subr.mxu0 0.0
    %775 = vmatpush2.msra.mxu0 0.0
    %776 = vmatprep.subr.mxu0 0.0
    %777 = vmatpush2.msra.mxu0 0.0
    %778 = vmatprep.mubr.f32.mxu0 0.0
    %779 = vmatmul.mubr.f32.gmra.mxu0 %v712
    %v780 = vpop.f32.mrf.mxu0
    %v781 = vadd.f32 0.0, %v780
    %v782 = vpop.f32.mrf.mxu0
    %783 = vdwg.mxu0
    %v785 = vrot.slane %v781, 4
    %v787 = vadd.f32 %v159, %v785
    %v788 = vtanh.pop %v787
    %v789 = vxor.u32 %v787, 2147483648
    %v790 = vmul.f32 %v789, 1.442695
    %v791 = vpow.pop %v790
    %v792 = vadd.f32 %v791, 1.0
    %v793 = vrcp.pop %v792
    %v794 = vmul.f32 1.0, %v793
    %v795 = vrot.slane %v662, 7
    %v797 = vadd.f32 %v787, %v795
    %799 = vrot.lane.b32.xlu0 %v787, 32
    %v800 = vpop.permute.xlu0 %799
    %v802 = vmax.f32 %v797, %v800
    %804 = vrot.lane.b32.xlu0 %v802, 96
    %v805 = vpop.permute.xlu0 %804
    %v807 = vsub.f32 %v787, %v805
    %v808 = vmul.f32 %v807, 1.442695
    %v809 = vpow.pop %v808
    %v810 = vsub.f32 %v797, %v802
    %v811 = vmul.f32 %v810, 1.442695
    %v812 = vpow.pop %v811
    %v813 = vrot.slane %v685, 7
    %v815 = vmul.f32 %v812, %v813
    %817 = vrot.lane.b32.xlu0 %v788, 64
    %v818 = vpop.permute.xlu0 %817
    %v820 = vmul.f32 %v809, %v818
    %822 = vrot.lane.b32.xlu0 %v820, 32
    %v823 = vpop.permute.xlu0 %822
    %v825 = vadd.f32 %v815, %v823
    %v827 = vrot.slane %v694, 7
    %v829 = vmul.f32 %v812, %v827
    %831 = vrot.lane.b32.xlu0 %v809, 32
    %v832 = vpop.permute.xlu0 %831
    %v834 = vadd.f32 %v829, %v832
    %836 = vrot.lane.b32.xlu0 %v825, 64
    %v837 = vpop.permute.xlu0 %836
    %v839 = vmul.f32 %v794, %v837
    %v840 = vand.u32 2147483647, %v834
    %v841 = vmax.f32 %v840, 1e-06
    %843 = vrot.lane.b32.xlu0 %v841, 64
    %v844 = vpop.permute.xlu0 %843
    %v846 = vrcp.pop %v844
    %v847 = vmul.f32 %v839, %v846
    %v849 = vrot.slane %v847, 4
    %850 = vrot.lane.b32.xlu0 %v849, 32
    %v851 = vpop.permute.xlu0 %850
    %v852 = vsel %vm162, %v851, 0
    %854 = vmatprep.subr.mxu0 0.0
    %855 = vmatpush1.msra.mxu0 0.0
    %856 = vmatprep.subr.mxu0 0.0
    %857 = vmatpush1.msra.mxu0 0.0
    %858 = vmatprep.subr.mxu0 0.0
    %859 = vmatpush1.msra.mxu0 0.0
    %860 = vmatprep.subr.mxu0 0.0
    %861 = vmatpush1.msra.mxu0 0.0
    %862 = vmatprep.subr.mxu0 0.0
    %863 = vmatpush1.msra.mxu0 0.0
    %864 = vmatprep.subr.mxu0 0.0
    %865 = vmatpush1.msra.mxu0 0.0
    %866 = vmatprep.subr.mxu0 0.0
    %867 = vmatpush1.msra.mxu0 0.0
    %868 = vmatprep.subr.mxu0 0.0
    %869 = vmatpush1.msra.mxu0 0.0
    %870 = vmatprep.subr.mxu0 0.0
    %871 = vmatpush1.msra.mxu0 0.0
    %872 = vmatprep.subr.mxu0 0.0
    %873 = vmatpush1.msra.mxu0 0.0
    %874 = vmatprep.subr.mxu0 0.0
    %875 = vmatpush1.msra.mxu0 0.0
    %876 = vmatprep.subr.mxu0 0.0
    %877 = vmatpush1.msra.mxu0 0.0
    %878 = vmatprep.subr.mxu0 0.0
    %879 = vmatpush1.msra.mxu0 %v68
    %880 = vmatprep.subr.mxu0 0.0
    %881 = vmatpush1.msra.mxu0 %v67
    %882 = vmatprep.subr.mxu0 0.0
    %883 = vmatpush1.msra.mxu0 %v66
    %884 = vmatprep.subr.mxu0 0.0
    %885 = vmatpush1.msra.mxu0 %v65
    %886 = vmatprep.subr.mxu0 0.0
    %887 = vmatpush2.msra.mxu0 0.0
    %888 = vmatprep.subr.mxu0 0.0
    %889 = vmatpush2.msra.mxu0 0.0
    %890 = vmatprep.subr.mxu0 0.0
    %891 = vmatpush2.msra.mxu0 0.0
    %892 = vmatprep.subr.mxu0 0.0
    %893 = vmatpush2.msra.mxu0 0.0
    %894 = vmatprep.subr.mxu0 0.0
    %895 = vmatpush2.msra.mxu0 0.0
    %896 = vmatprep.subr.mxu0 0.0
    %897 = vmatpush2.msra.mxu0 0.0
    %898 = vmatprep.subr.mxu0 0.0
    %899 = vmatpush2.msra.mxu0 0.0
    %900 = vmatprep.subr.mxu0 0.0
    %901 = vmatpush2.msra.mxu0 0.0
    %902 = vmatprep.subr.mxu0 0.0
    %903 = vmatpush2.msra.mxu0 0.0
    %904 = vmatprep.subr.mxu0 0.0
    %905 = vmatpush2.msra.mxu0 0.0
    %906 = vmatprep.subr.mxu0 0.0
    %907 = vmatpush2.msra.mxu0 0.0
    %908 = vmatprep.subr.mxu0 0.0
    %909 = vmatpush2.msra.mxu0 0.0
    %910 = vmatprep.subr.mxu0 0.0
    %911 = vmatpush2.msra.mxu0 0.0
    %912 = vmatprep.subr.mxu0 0.0
    %913 = vmatpush2.msra.mxu0 0.0
    %914 = vmatprep.subr.mxu0 0.0
    %915 = vmatpush2.msra.mxu0 0.0
    %916 = vmatprep.subr.mxu0 0.0
    %917 = vmatpush2.msra.mxu0 0.0
    %918 = vmatprep.mubr.f32.mxu0 0.0
    %919 = vmatmul.mubr.f32.gmra.mxu0 %v852
    %v920 = vpop.f32.mrf.mxu0
    %v921 = vadd.f32 0.0, %v920
    %v922 = vpop.f32.mrf.mxu0
    %923 = vdwg.mxu0
    %v925 = vrot.slane %v921, 3
    %v927 = vadd.f32 %v159, %v925
    %v928 = vtanh.pop %v927
    %v929 = vxor.u32 %v927, 2147483648
    %v930 = vmul.f32 %v929, 1.442695
    %v931 = vpow.pop %v930
    %v932 = vadd.f32 %v931, 1.0
    %v933 = vrcp.pop %v932
    %v934 = vmul.f32 1.0, %v933
    %v935 = vrot.slane %v802, 7
    %v937 = vadd.f32 %v927, %v935
    %939 = vrot.lane.b32.xlu0 %v927, 32
    %v940 = vpop.permute.xlu0 %939
    %v942 = vmax.f32 %v937, %v940
    %944 = vrot.lane.b32.xlu0 %v942, 96
    %v945 = vpop.permute.xlu0 %944
    %v947 = vsub.f32 %v927, %v945
    %v948 = vmul.f32 %v947, 1.442695
    %v949 = vpow.pop %v948
    %v950 = vsub.f32 %v937, %v942
    %v951 = vmul.f32 %v950, 1.442695
    %v952 = vpow.pop %v951
    %v953 = vrot.slane %v825, 7
    %v955 = vmul.f32 %v952, %v953
    %957 = vrot.lane.b32.xlu0 %v928, 64
    %v958 = vpop.permute.xlu0 %957
    %v960 = vmul.f32 %v949, %v958
    %962 = vrot.lane.b32.xlu0 %v960, 32
    %v963 = vpop.permute.xlu0 %962
    %v965 = vadd.f32 %v955, %v963
    %v967 = vrot.slane %v834, 7
    %v969 = vmul.f32 %v952, %v967
    %971 = vrot.lane.b32.xlu0 %v949, 32
    %v972 = vpop.permute.xlu0 %971
    %v974 = vadd.f32 %v969, %v972
    %976 = vrot.lane.b32.xlu0 %v965, 64
    %v977 = vpop.permute.xlu0 %976
    %v979 = vmul.f32 %v934, %v977
    %v980 = vand.u32 2147483647, %v974
    %v981 = vmax.f32 %v980, 1e-06
    %983 = vrot.lane.b32.xlu0 %v981, 64
    %v984 = vpop.permute.xlu0 %983
    %v986 = vrcp.pop %v984
    %v987 = vmul.f32 %v979, %v986
    %v989 = vrot.slane %v987, 5
    %990 = vrot.lane.b32.xlu0 %v989, 32
    %v991 = vpop.permute.xlu0 %990
    %v992 = vsel %vm162, %v991, 0
    %994 = vmatprep.subr.mxu0 0.0
    %995 = vmatpush1.msra.mxu0 0.0
    %996 = vmatprep.subr.mxu0 0.0
    %997 = vmatpush1.msra.mxu0 0.0
    %998 = vmatprep.subr.mxu0 0.0
    %999 = vmatpush1.msra.mxu0 0.0
    %1000 = vmatprep.subr.mxu0 0.0
    %1001 = vmatpush1.msra.mxu0 0.0
    %1002 = vmatprep.subr.mxu0 0.0
    %1003 = vmatpush1.msra.mxu0 0.0
    %1004 = vmatprep.subr.mxu0 0.0
    %1005 = vmatpush1.msra.mxu0 0.0
    %1006 = vmatprep.subr.mxu0 0.0
    %1007 = vmatpush1.msra.mxu0 0.0
    %1008 = vmatprep.subr.mxu0 0.0
    %1009 = vmatpush1.msra.mxu0 0.0
    %1010 = vmatprep.subr.mxu0 0.0
    %1011 = vmatpush1.msra.mxu0 0.0
    %1012 = vmatprep.subr.mxu0 0.0
    %1013 = vmatpush1.msra.mxu0 0.0
    %1014 = vmatprep.subr.mxu0 0.0
    %1015 = vmatpush1.msra.mxu0 0.0
    %1016 = vmatprep.subr.mxu0 0.0
    %1017 = vmatpush1.msra.mxu0 0.0
    %1018 = vmatprep.subr.mxu0 0.0
    %1019 = vmatpush1.msra.mxu0 %v68
    %1020 = vmatprep.subr.mxu0 0.0
    %1021 = vmatpush1.msra.mxu0 %v67
    %1022 = vmatprep.subr.mxu0 0.0
    %1023 = vmatpush1.msra.mxu0 %v66
    %1024 = vmatprep.subr.mxu0 0.0
    %1025 = vmatpush1.msra.mxu0 %v65
    %1026 = vmatprep.subr.mxu0 0.0
    %1027 = vmatpush2.msra.mxu0 0.0
    %1028 = vmatprep.subr.mxu0 0.0
    %1029 = vmatpush2.msra.mxu0 0.0
    %1030 = vmatprep.subr.mxu0 0.0
    %1031 = vmatpush2.msra.mxu0 0.0
    %1032 = vmatprep.subr.mxu0 0.0
    %1033 = vmatpush2.msra.mxu0 0.0
    %1034 = vmatprep.subr.mxu0 0.0
    %1035 = vmatpush2.msra.mxu0 0.0
    %1036 = vmatprep.subr.mxu0 0.0
    %1037 = vmatpush2.msra.mxu0 0.0
    %1038 = vmatprep.subr.mxu0 0.0
    %1039 = vmatpush2.msra.mxu0 0.0
    %1040 = vmatprep.subr.mxu0 0.0
    %1041 = vmatpush2.msra.mxu0 0.0
    %1042 = vmatprep.subr.mxu0 0.0
    %1043 = vmatpush2.msra.mxu0 0.0
    %1044 = vmatprep.subr.mxu0 0.0
    %1045 = vmatpush2.msra.mxu0 0.0
    %1046 = vmatprep.subr.mxu0 0.0
    %1047 = vmatpush2.msra.mxu0 0.0
    %1048 = vmatprep.subr.mxu0 0.0
    %1049 = vmatpush2.msra.mxu0 0.0
    %1050 = vmatprep.subr.mxu0 0.0
    %1051 = vmatpush2.msra.mxu0 0.0
    %1052 = vmatprep.subr.mxu0 0.0
    %1053 = vmatpush2.msra.mxu0 0.0
    %1054 = vmatprep.subr.mxu0 0.0
    %1055 = vmatpush2.msra.mxu0 0.0
    %1056 = vmatprep.subr.mxu0 0.0
    %1057 = vmatpush2.msra.mxu0 0.0
    %1058 = vmatprep.mubr.f32.mxu0 0.0
    %1059 = vmatmul.mubr.f32.gmra.mxu0 %v992
    %v1060 = vpop.f32.mrf.mxu0
    %v1061 = vadd.f32 0.0, %v1060
    %v1062 = vpop.f32.mrf.mxu0
    %1063 = vdwg.mxu0
    %v1065 = vrot.slane %v1061, 2
    %v1067 = vadd.f32 %v159, %v1065
    %v1068 = vtanh.pop %v1067
    %v1069 = vxor.u32 %v1067, 2147483648
    %v1070 = vmul.f32 %v1069, 1.442695
    %v1071 = vpow.pop %v1070
    %v1072 = vadd.f32 %v1071, 1.0
    %v1073 = vrcp.pop %v1072
    %v1074 = vmul.f32 1.0, %v1073
    %v1075 = vrot.slane %v942, 7
    %v1077 = vadd.f32 %v1067, %v1075
    %1079 = vrot.lane.b32.xlu0 %v1067, 32
    %v1080 = vpop.permute.xlu0 %1079
    %v1082 = vmax.f32 %v1077, %v1080
    %1084 = vrot.lane.b32.xlu0 %v1082, 96
    %v1085 = vpop.permute.xlu0 %1084
    %v1087 = vsub.f32 %v1067, %v1085
    %v1088 = vmul.f32 %v1087, 1.442695
    %v1089 = vpow.pop %v1088
    %v1090 = vsub.f32 %v1077, %v1082
    %v1091 = vmul.f32 %v1090, 1.442695
    %v1092 = vpow.pop %v1091
    %v1093 = vrot.slane %v965, 7
    %v1095 = vmul.f32 %v1092, %v1093
    %1097 = vrot.lane.b32.xlu0 %v1068, 64
    %v1098 = vpop.permute.xlu0 %1097
    %v1100 = vmul.f32 %v1089, %v1098
    %1102 = vrot.lane.b32.xlu0 %v1100, 32
    %v1103 = vpop.permute.xlu0 %1102
    %v1105 = vadd.f32 %v1095, %v1103
    %v1107 = vrot.slane %v974, 7
    %v1109 = vmul.f32 %v1092, %v1107
    %1111 = vrot.lane.b32.xlu0 %v1089, 32
    %v1112 = vpop.permute.xlu0 %1111
    %v1114 = vadd.f32 %v1109, %v1112
    %1116 = vrot.lane.b32.xlu0 %v1105, 64
    %v1117 = vpop.permute.xlu0 %1116
    %v1119 = vmul.f32 %v1074, %v1117
    %v1120 = vand.u32 2147483647, %v1114
    %v1121 = vmax.f32 %v1120, 1e-06
    %1123 = vrot.lane.b32.xlu0 %v1121, 64
    %v1124 = vpop.permute.xlu0 %1123
    %v1126 = vrcp.pop %v1124
    %v1127 = vmul.f32 %v1119, %v1126
    %v1129 = vrot.slane %v1127, 6
    %1130 = vrot.lane.b32.xlu0 %v1129, 32
    %v1131 = vpop.permute.xlu0 %1130
    %v1132 = vsel %vm162, %v1131, 0
    %1134 = vmatprep.subr.mxu0 0.0
    %1135 = vmatpush1.msra.mxu0 0.0
    %1136 = vmatprep.subr.mxu0 0.0
    %1137 = vmatpush1.msra.mxu0 0.0
    %1138 = vmatprep.subr.mxu0 0.0
    %1139 = vmatpush1.msra.mxu0 0.0
    %1140 = vmatprep.subr.mxu0 0.0
    %1141 = vmatpush1.msra.mxu0 0.0
    %1142 = vmatprep.subr.mxu0 0.0
    %1143 = vmatpush1.msra.mxu0 0.0
    %1144 = vmatprep.subr.mxu0 0.0
    %1145 = vmatpush1.msra.mxu0 0.0
    %1146 = vmatprep.subr.mxu0 0.0
    %1147 = vmatpush1.msra.mxu0 0.0
    %1148 = vmatprep.subr.mxu0 0.0
    %1149 = vmatpush1.msra.mxu0 0.0
    %1150 = vmatprep.subr.mxu0 0.0
    %1151 = vmatpush1.msra.mxu0 0.0
    %1152 = vmatprep.subr.mxu0 0.0
    %1153 = vmatpush1.msra.mxu0 0.0
    %1154 = vmatprep.subr.mxu0 0.0
    %1155 = vmatpush1.msra.mxu0 0.0
    %1156 = vmatprep.subr.mxu0 0.0
    %1157 = vmatpush1.msra.mxu0 0.0
    %1158 = vmatprep.subr.mxu0 0.0
    %1159 = vmatpush1.msra.mxu0 %v68
    %1160 = vmatprep.subr.mxu0 0.0
    %1161 = vmatpush1.msra.mxu0 %v67
    %1162 = vmatprep.subr.mxu0 0.0
    %1163 = vmatpush1.msra.mxu0 %v66
    %1164 = vmatprep.subr.mxu0 0.0
    %1165 = vmatpush1.msra.mxu0 %v65
    %1166 = vmatprep.subr.mxu0 0.0
    %1167 = vmatpush2.msra.mxu0 0.0
    %1168 = vmatprep.subr.mxu0 0.0
    %1169 = vmatpush2.msra.mxu0 0.0
    %1170 = vmatprep.subr.mxu0 0.0
    %1171 = vmatpush2.msra.mxu0 0.0
    %1172 = vmatprep.subr.mxu0 0.0
    %1173 = vmatpush2.msra.mxu0 0.0
    %1174 = vmatprep.subr.mxu0 0.0
    %1175 = vmatpush2.msra.mxu0 0.0
    %1176 = vmatprep.subr.mxu0 0.0
    %1177 = vmatpush2.msra.mxu0 0.0
    %1178 = vmatprep.subr.mxu0 0.0
    %1179 = vmatpush2.msra.mxu0 0.0
    %1180 = vmatprep.subr.mxu0 0.0
    %1181 = vmatpush2.msra.mxu0 0.0
    %1182 = vmatprep.subr.mxu0 0.0
    %1183 = vmatpush2.msra.mxu0 0.0
    %1184 = vmatprep.subr.mxu0 0.0
    %1185 = vmatpush2.msra.mxu0 0.0
    %1186 = vmatprep.subr.mxu0 0.0
    %1187 = vmatpush2.msra.mxu0 0.0
    %1188 = vmatprep.subr.mxu0 0.0
    %1189 = vmatpush2.msra.mxu0 0.0
    %1190 = vmatprep.subr.mxu0 0.0
    %1191 = vmatpush2.msra.mxu0 0.0
    %1192 = vmatprep.subr.mxu0 0.0
    %1193 = vmatpush2.msra.mxu0 0.0
    %1194 = vmatprep.subr.mxu0 0.0
    %1195 = vmatpush2.msra.mxu0 0.0
    %1196 = vmatprep.subr.mxu0 0.0
    %1197 = vmatpush2.msra.mxu0 0.0
    %1198 = vmatprep.mubr.f32.mxu0 0.0
    %1199 = vmatmul.mubr.f32.gmra.mxu0 %v1132
    %v1200 = vpop.f32.mrf.mxu0
    %v1201 = vadd.f32 0.0, %v1200
    %v1202 = vpop.f32.mrf.mxu0
    %1203 = vdwg.mxu0
    %v1205 = vrot.slane %v1201, 1
    %v1207 = vadd.f32 %v159, %v1205
    %v1208 = vtanh.pop %v1207
    %v1209 = vxor.u32 %v1207, 2147483648
    %v1210 = vmul.f32 %v1209, 1.442695
    %v1211 = vpow.pop %v1210
    %v1212 = vadd.f32 %v1211, 1.0
    %v1213 = vrcp.pop %v1212
    %v1214 = vmul.f32 1.0, %v1213
    %v1215 = vrot.slane %v1082, 7
    %v1217 = vadd.f32 %v1207, %v1215
    %1219 = vrot.lane.b32.xlu0 %v1207, 32
    %v1220 = vpop.permute.xlu0 %1219
    %v1222 = vmax.f32 %v1217, %v1220
    %1224 = vrot.lane.b32.xlu0 %v1222, 96
    %v1225 = vpop.permute.xlu0 %1224
    %v1227 = vsub.f32 %v1207, %v1225
    %v1228 = vmul.f32 %v1227, 1.442695
    %v1229 = vpow.pop %v1228
    %v1230 = vsub.f32 %v1217, %v1222
    %v1231 = vmul.f32 %v1230, 1.442695
    %v1232 = vpow.pop %v1231
    %v1233 = vrot.slane %v1105, 7
    %v1235 = vmul.f32 %v1232, %v1233
    %1237 = vrot.lane.b32.xlu0 %v1208, 64
    %v1238 = vpop.permute.xlu0 %1237
    %v1240 = vmul.f32 %v1229, %v1238
    %1242 = vrot.lane.b32.xlu0 %v1240, 32
    %v1243 = vpop.permute.xlu0 %1242
    %v1245 = vadd.f32 %v1235, %v1243
    %v1247 = vrot.slane %v1114, 7
    %v1249 = vmul.f32 %v1232, %v1247
    %1251 = vrot.lane.b32.xlu0 %v1229, 32
    %v1252 = vpop.permute.xlu0 %1251
    %v1254 = vadd.f32 %v1249, %v1252
    %1256 = vrot.lane.b32.xlu0 %v1245, 64
    %v1257 = vpop.permute.xlu0 %1256
    %v1259 = vmul.f32 %v1214, %v1257
    %v1260 = vand.u32 2147483647, %v1254
    %v1261 = vmax.f32 %v1260, 1e-06
    %1263 = vrot.lane.b32.xlu0 %v1261, 64
    %v1264 = vpop.permute.xlu0 %1263
    %v1266 = vrcp.pop %v1264
    %v1267 = vmul.f32 %v1259, %v1266
    %vm1268 = vcmask 1040384
    %v1269 = vsel %vm1268, %v288, %v427
    %vm1270 = vcmask 1041408
    %v1271 = vsel %vm1270, %v1269, %v567
    %vm1272 = vcmask 1042432
    %v1273 = vsel %vm1272, %v1271, %v707
    %vm1274 = vcmask 1043456
    %v1275 = vsel %vm1274, %v1273, %v847
    %vm1276 = vcmask 1044480
    %v1277 = vsel %vm1276, %v1275, %v987
    %vm1278 = vcmask 1045504
    %v1279 = vsel %vm1278, %v1277, %v1127
    %vm1280 = vcmask 1046528
    %v1281 = vsel %vm1280, %v1279, %v1267
    %1283 = vrot.lane.b32.xlu0 %v1281, 32
    %v1284 = vpop.permute.xlu0 %1283
    %v1285 = vsel %vm162, %v1284, 0
    %1287 = vmatprep.subr.mxu0 0.0
    %1288 = vmatpush1.msra.mxu0 0.0
    %1289 = vmatprep.subr.mxu0 0.0
    %1290 = vmatpush1.msra.mxu0 0.0
    %1291 = vmatprep.subr.mxu0 0.0
    %1292 = vmatpush1.msra.mxu0 0.0
    %1293 = vmatprep.subr.mxu0 0.0
    %1294 = vmatpush1.msra.mxu0 0.0
    %1295 = vmatprep.subr.mxu0 0.0
    %1296 = vmatpush1.msra.mxu0 0.0
    %1297 = vmatprep.subr.mxu0 0.0
    %1298 = vmatpush1.msra.mxu0 0.0
    %1299 = vmatprep.subr.mxu0 0.0
    %1300 = vmatpush1.msra.mxu0 0.0
    %1301 = vmatprep.subr.mxu0 0.0
    %1302 = vmatpush1.msra.mxu0 0.0
    %1303 = vmatprep.subr.mxu0 0.0
    %1304 = vmatpush1.msra.mxu0 0.0
    %1305 = vmatprep.subr.mxu0 0.0
    %1306 = vmatpush1.msra.mxu0 0.0
    %1307 = vmatprep.subr.mxu0 0.0
    %1308 = vmatpush1.msra.mxu0 0.0
    %1309 = vmatprep.subr.mxu0 0.0
    %1310 = vmatpush1.msra.mxu0 0.0
    %1311 = vmatprep.subr.mxu0 0.0
    %1312 = vmatpush1.msra.mxu0 %v73
    %1313 = vmatprep.subr.mxu0 0.0
    %1314 = vmatpush1.msra.mxu0 %v72
    %1315 = vmatprep.subr.mxu0 0.0
    %1316 = vmatpush1.msra.mxu0 %v71
    %1317 = vmatprep.subr.mxu0 0.0
    %1318 = vmatpush1.msra.mxu0 %v70
    %1319 = vmatprep.subr.mxu0 0.0
    %1320 = vmatpush2.msra.mxu0 0.0
    %1321 = vmatprep.subr.mxu0 0.0
    %1322 = vmatpush2.msra.mxu0 0.0
    %1323 = vmatprep.subr.mxu0 0.0
    %1324 = vmatpush2.msra.mxu0 0.0
    %1325 = vmatprep.subr.mxu0 0.0
    %1326 = vmatpush2.msra.mxu0 0.0
    %1327 = vmatprep.subr.mxu0 0.0
    %1328 = vmatpush2.msra.mxu0 0.0
    %1329 = vmatprep.subr.mxu0 0.0
    %1330 = vmatpush2.msra.mxu0 0.0
    %1331 = vmatprep.subr.mxu0 0.0
    %1332 = vmatpush2.msra.mxu0 0.0
    %1333 = vmatprep.subr.mxu0 0.0
    %1334 = vmatpush2.msra.mxu0 0.0
    %1335 = vmatprep.subr.mxu0 0.0
    %1336 = vmatpush2.msra.mxu0 0.0
    %1337 = vmatprep.subr.mxu0 0.0
    %1338 = vmatpush2.msra.mxu0 0.0
    %1339 = vmatprep.subr.mxu0 0.0
    %1340 = vmatpush2.msra.mxu0 0.0
    %1341 = vmatprep.subr.mxu0 0.0
    %1342 = vmatpush2.msra.mxu0 0.0
    %1343 = vmatprep.subr.mxu0 0.0
    %1344 = vmatpush2.msra.mxu0 0.0
    %1345 = vmatprep.subr.mxu0 0.0
    %1346 = vmatpush2.msra.mxu0 0.0
    %1347 = vmatprep.subr.mxu0 0.0
    %1348 = vmatpush2.msra.mxu0 0.0
    %1349 = vmatprep.subr.mxu0 0.0
    %1350 = vmatpush2.msra.mxu0 0.0
    %1351 = vmatprep.mubr.f32.mxu0 0.0
    %1352 = vmatmul.mubr.f32.gmra.mxu0 %v1285
    %v1353 = vpop.f32.mrf.mxu0
    %v1354 = vadd.f32 0.0, %v1353
    %v1355 = vpop.f32.mrf.mxu0
    %1356 = vdwg.mxu0
    %v1357 = vmul.f32 %v1354, %v1354
    %v1358 = vmul.f32 %v1354, %v1357
    %v1359 = vmul.f32 %v1358, 0.044715
    %v1360 = vadd.f32 %v1354, %v1359
    %v1361 = vmul.f32 %v1360, 0.7978846
    %v1362 = vtanh.pop %v1361
    %v1363 = vadd.f32 %v1362, 1.0
    %v1364 = vmul.f32 %v1363, 0.5
    %v1365 = vmul.f32 %v1354, %v1364
    %vm1366 = vcmask 523264
    %v1368 = vsel %vm1366, %v1365, 0
    %1370 = vmatprep.subr.mxu0 0.0
    %1371 = vmatpush1.msra.mxu0 0.0
    %1372 = vmatprep.subr.mxu0 0.0
    %1373 = vmatpush1.msra.mxu0 0.0
    %1374 = vmatprep.subr.mxu0 0.0
    %1375 = vmatpush1.msra.mxu0 0.0
    %1376 = vmatprep.subr.mxu0 0.0
    %1377 = vmatpush1.msra.mxu0 0.0
    %1378 = vmatprep.subr.mxu0 0.0
    %1379 = vmatpush1.msra.mxu0 0.0
    %1380 = vmatprep.subr.mxu0 0.0
    %1381 = vmatpush1.msra.mxu0 0.0
    %1382 = vmatprep.subr.mxu0 0.0
    %1383 = vmatpush1.msra.mxu0 0.0
    %1384 = vmatprep.subr.mxu0 0.0
    %1385 = vmatpush1.msra.mxu0 0.0
    %1386 = vmatprep.subr.mxu0 0.0
    %1387 = vmatpush1.msra.mxu0 %v81
    %1388 = vmatprep.subr.mxu0 0.0
    %1389 = vmatpush1.msra.mxu0 %v80
    %1390 = vmatprep.subr.mxu0 0.0
    %1391 = vmatpush1.msra.mxu0 %v79
    %1392 = vmatprep.subr.mxu0 0.0
    %1393 = vmatpush1.msra.mxu0 %v78
    %1394 = vmatprep.subr.mxu0 0.0
    %1395 = vmatpush1.msra.mxu0 %v77
    %1396 = vmatprep.subr.mxu0 0.0
    %1397 = vmatpush1.msra.mxu0 %v76
    %1398 = vmatprep.subr.mxu0 0.0
    %1399 = vmatpush1.msra.mxu0 %v75
    %1400 = vmatprep.subr.mxu0 0.0
    %1401 = vmatpush1.msra.mxu0 %v74
    %1402 = vmatprep.subr.mxu0 0.0
    %1403 = vmatpush2.msra.mxu0 0.0
    %1404 = vmatprep.subr.mxu0 0.0
    %1405 = vmatpush2.msra.mxu0 0.0
    %1406 = vmatprep.subr.mxu0 0.0
    %1407 = vmatpush2.msra.mxu0 0.0
    %1408 = vmatprep.subr.mxu0 0.0
    %1409 = vmatpush2.msra.mxu0 0.0
    %1410 = vmatprep.subr.mxu0 0.0
    %1411 = vmatpush2.msra.mxu0 0.0
    %1412 = vmatprep.subr.mxu0 0.0
    %1413 = vmatpush2.msra.mxu0 0.0
    %1414 = vmatprep.subr.mxu0 0.0
    %1415 = vmatpush2.msra.mxu0 0.0
    %1416 = vmatprep.subr.mxu0 0.0
    %1417 = vmatpush2.msra.mxu0 0.0
    %1418 = vmatprep.subr.mxu0 0.0
    %1419 = vmatpush2.msra.mxu0 0.0
    %1420 = vmatprep.subr.mxu0 0.0
    %1421 = vmatpush2.msra.mxu0 0.0
    %1422 = vmatprep.subr.mxu0 0.0
    %1423 = vmatpush2.msra.mxu0 0.0
    %1424 = vmatprep.subr.mxu0 0.0
    %1425 = vmatpush2.msra.mxu0 0.0
    %1426 = vmatprep.subr.mxu0 0.0
    %1427 = vmatpush2.msra.mxu0 0.0
    %1428 = vmatprep.subr.mxu0 0.0
    %1429 = vmatpush2.msra.mxu0 0.0
    %1430 = vmatprep.subr.mxu0 0.0
    %1431 = vmatpush2.msra.mxu0 0.0
    %1432 = vmatprep.subr.mxu0 0.0
    %1433 = vmatpush2.msra.mxu0 0.0
    %1434 = vmatprep.mubr.f32.mxu0 0.0
    %1435 = vmatmul.mubr.f32.gmra.mxu0 %v1368
    %v1436 = vpop.f32.mrf.mxu0
    %v1437 = vadd.f32 0.0, %v1436
    %v1438 = vpop.f32.mrf.mxu0
    %1439 = vdwg.mxu0
    %1441 = vrot.lane.b32.xlu0 %v1437, 96
    %v1442 = vpop.permute.xlu0 %1441
    %v1444 = vadd.f32 %v1281, %v1442
    %v1445 = vld [vmem:[%s6] sm:$0xff]
    %v1446 = vld [vmem:[%s6 + $0x8] sm:$0xff]
    %v1447 = vld [vmem:[%s6 + $0x10] sm:$0xff]
    %v1448 = vld [vmem:[%s6 + $0x18] sm:$0xff]
    %v1449 = vld [vmem:[%s6 + $0x20] sm:$0xff]
    %v1450 = vld [vmem:[%s6 + $0x28] sm:$0xff]
    %v1451 = vld [vmem:[%s6 + $0x30] sm:$0xff]
    %v1452 = vld [vmem:[%s6 + $0x38] sm:$0xff]
    %v1453 = vld [vmem:[%s7] sm:$0x3]
    %v1454 = vld [vmem:[%s8] sm:$0xff]
    %v1455 = vld [vmem:[%s8 + $0x8] sm:$0xff]
    %v1456 = vld [vmem:[%s8 + $0x10] sm:$0xff]
    %v1457 = vld [vmem:[%s8 + $0x18] sm:$0xff]
    %v1458 = vld [vmem:[%s9] sm:$0xff]
    %v1459 = vld [vmem:[%s9 + $0x8] sm:$0xff]
    %v1460 = vld [vmem:[%s9 + $0x10] sm:$0xff]
    %v1461 = vld [vmem:[%s9 + $0x18] sm:$0xff]
    %v1462 = vld [vmem:[%s9 + $0x20] sm:$0xff]
    %v1463 = vld [vmem:[%s9 + $0x28] sm:$0xff]
    %v1464 = vld [vmem:[%s9 + $0x30] sm:$0xff]
    %v1465 = vld [vmem:[%s9 + $0x38] sm:$0xff]
    %v1467 = vlaneseq
    %v1468 = vshrl.u32 %v1467, 7
    %v1469 = vsub.s32 0, %v1468
    %v1470 = vrot.slane %v1453, %v1469
    %v1471 = vlaneseq
    %v1472 = vshrl.u32 %v1471, 7
    %v1473 = vsub.s32 1, %v1472
    %v1474 = vrot.slane %v1453, %v1473
    %1478 = vrot.lane.b32.xlu0 %v1444, 32
    %v1479 = vpop.permute.xlu0 %1478
    %v1480 = vsel %vm162, %v1479, 0
    %1482 = vmatprep.subr.mxu0 0.0
    %1483 = vmatpush1.msra.mxu0 0.0
    %1484 = vmatprep.subr.mxu0 0.0
    %1485 = vmatpush1.msra.mxu0 0.0
    %1486 = vmatprep.subr.mxu0 0.0
    %1487 = vmatpush1.msra.mxu0 0.0
    %1488 = vmatprep.subr.mxu0 0.0
    %1489 = vmatpush1.msra.mxu0 0.0
    %1490 = vmatprep.subr.mxu0 0.0
    %1491 = vmatpush1.msra.mxu0 0.0
    %1492 = vmatprep.subr.mxu0 0.0
    %1493 = vmatpush1.msra.mxu0 0.0
    %1494 = vmatprep.subr.mxu0 0.0
    %1495 = vmatpush1.msra.mxu0 0.0
    %1496 = vmatprep.subr.mxu0 0.0
    %1497 = vmatpush1.msra.mxu0 0.0
    %1498 = vmatprep.subr.mxu0 0.0
    %1499 = vmatpush1.msra.mxu0 0.0
    %1500 = vmatprep.subr.mxu0 0.0
    %1501 = vmatpush1.msra.mxu0 0.0
    %1502 = vmatprep.subr.mxu0 0.0
    %1503 = vmatpush1.msra.mxu0 0.0
    %1504 = vmatprep.subr.mxu0 0.0
    %1505 = vmatpush1.msra.mxu0 0.0
    %1506 = vmatprep.subr.mxu0 %v1452
    %1507 = vmatpush1.msra.mxu0 %v1451
    %1508 = vmatprep.subr.mxu0 %v1450
    %1509 = vmatpush1.msra.mxu0 %v1449
    %1510 = vmatprep.subr.mxu0 %v1448
    %1511 = vmatpush1.msra.mxu0 %v1447
    %1512 = vmatprep.subr.mxu0 %v1446
    %1513 = vmatpush1.msra.mxu0 %v1445
    %1514 = vmatprep.subr.mxu0 0.0
    %1515 = vmatpush2.msra.mxu0 0.0
    %1516 = vmatprep.subr.mxu0 0.0
    %1517 = vmatpush2.msra.mxu0 0.0
    %1518 = vmatprep.subr.mxu0 0.0
    %1519 = vmatpush2.msra.mxu0 0.0
    %1520 = vmatprep.subr.mxu0 0.0
    %1521 = vmatpush2.msra.mxu0 0.0
    %1522 = vmatprep.subr.mxu0 0.0
    %1523 = vmatpush2.msra.mxu0 0.0
    %1524 = vmatprep.subr.mxu0 0.0
    %1525 = vmatpush2.msra.mxu0 0.0
    %1526 = vmatprep.subr.mxu0 0.0
    %1527 = vmatpush2.msra.mxu0 0.0
    %1528 = vmatprep.subr.mxu0 0.0
    %1529 = vmatpush2.msra.mxu0 0.0
    %1530 = vmatprep.subr.mxu0 0.0
    %1531 = vmatpush2.msra.mxu0 0.0
    %1532 = vmatprep.subr.mxu0 0.0
    %1533 = vmatpush2.msra.mxu0 0.0
    %1534 = vmatprep.subr.mxu0 0.0
    %1535 = vmatpush2.msra.mxu0 0.0
    %1536 = vmatprep.subr.mxu0 0.0
    %1537 = vmatpush2.msra.mxu0 0.0
    %1538 = vmatprep.subr.mxu0 0.0
    %1539 = vmatpush2.msra.mxu0 0.0
    %1540 = vmatprep.subr.mxu0 0.0
    %1541 = vmatpush2.msra.mxu0 0.0
    %1542 = vmatprep.subr.mxu0 0.0
    %1543 = vmatpush2.msra.mxu0 0.0
    %1544 = vmatprep.subr.mxu0 0.0
    %1545 = vmatpush2.msra.mxu0 0.0
    %1546 = vmatprep.mubr.f32.mxu0 0.0
    %1547 = vmatmul.mubr.f32.gmra.mxu0 %v1480
    %v1548 = vpop.f32.mrf.mxu0
    %v1549 = vadd.f32 %v1470, %v1548
    %v1550 = vpop.f32.mrf.mxu0
    %v1551 = vadd.f32 %v1474, %v1550
    %1552 = vdwg.mxu0
    %v1553 = vmul.f32 %v1549, 0.17677669
    %v1554 = vxor.u32 %v1549, 2147483648
    %v1555 = vmul.f32 %v1554, 1.442695
    %v1556 = vpow.pop %v1555
    %v1557 = vadd.f32 %v1556, 1.0
    %v1558 = vrcp.pop %v1557
    %v1559 = vmul.f32 1.0, %v1558
    %v1560 = vlaneseq
    %v1561 = vshrl.u32 %v1560, 7
    %v1562 = vlaneseq
    %v1563 = vand.u32 %v1562, 127
    %vm1564 = vcmp.ge.s32.totalorder %v1561, %v1563
    %v1565 = vsel %vm1564, 1, 0
    %v1566 = vcvt.s32.f32 %v1565
    %1568 = vrot.lane.b32.xlu0 %v1551, 127
    %v1569 = vpop.permute.xlu0 %1568
    %vm1571 = vcmask 64512
    %v1573 = vsel %vm1571, %v1566, 0
    %1575 = vmatprep.subr.mxu0 0.0
    %1576 = vmatpush1.msra.mxu0 0.0
    %1577 = vmatprep.subr.mxu0 0.0
    %1578 = vmatpush1.msra.mxu0 0.0
    %1579 = vmatprep.subr.mxu0 0.0
    %1580 = vmatpush1.msra.mxu0 0.0
    %1581 = vmatprep.subr.mxu0 0.0
    %1582 = vmatpush1.msra.mxu0 0.0
    %1583 = vmatprep.subr.mxu0 0.0
    %1584 = vmatpush1.msra.mxu0 0.0
    %1585 = vmatprep.subr.mxu0 0.0
    %1586 = vmatpush1.msra.mxu0 0.0
    %1587 = vmatprep.subr.mxu0 0.0
    %1588 = vmatpush1.msra.mxu0 0.0
    %1589 = vmatprep.subr.mxu0 0.0
    %1590 = vmatpush1.msra.mxu0 0.0
    %1591 = vmatprep.subr.mxu0 0.0
    %1592 = vmatpush1.msra.mxu0 0.0
    %1593 = vmatprep.subr.mxu0 0.0
    %1594 = vmatpush1.msra.mxu0 0.0
    %1595 = vmatprep.subr.mxu0 0.0
    %1596 = vmatpush1.msra.mxu0 0.0
    %1597 = vmatprep.subr.mxu0 0.0
    %1598 = vmatpush1.msra.mxu0 0.0
    %1599 = vmatprep.subr.mxu0 0.0
    %1600 = vmatpush1.msra.mxu0 0.0
    %1601 = vmatprep.subr.mxu0 0.0
    %1602 = vmatpush1.msra.mxu0 0.0
    %1603 = vmatprep.subr.mxu0 0.0
    %1604 = vmatpush1.msra.mxu0 0.0
    %1605 = vmatprep.subr.mxu0 0.0
    %1606 = vmatpush1.msra.mxu0 %v1569
    %1607 = vmatprep.subr.mxu0 0.0
    %1608 = vmatpush2.msra.mxu0 0.0
    %1609 = vmatprep.subr.mxu0 0.0
    %1610 = vmatpush2.msra.mxu0 0.0
    %1611 = vmatprep.subr.mxu0 0.0
    %1612 = vmatpush2.msra.mxu0 0.0
    %1613 = vmatprep.subr.mxu0 0.0
    %1614 = vmatpush2.msra.mxu0 0.0
    %1615 = vmatprep.subr.mxu0 0.0
    %1616 = vmatpush2.msra.mxu0 0.0
    %1617 = vmatprep.subr.mxu0 0.0
    %1618 = vmatpush2.msra.mxu0 0.0
    %1619 = vmatprep.subr.mxu0 0.0
    %1620 = vmatpush2.msra.mxu0 0.0
    %1621 = vmatprep.subr.mxu0 0.0
    %1622 = vmatpush2.msra.mxu0 0.0
    %1623 = vmatprep.subr.mxu0 0.0
    %1624 = vmatpush2.msra.mxu0 0.0
    %1625 = vmatprep.subr.mxu0 0.0
    %1626 = vmatpush2.msra.mxu0 0.0
    %1627 = vmatprep.subr.mxu0 0.0
    %1628 = vmatpush2.msra.mxu0 0.0
    %1629 = vmatprep.subr.mxu0 0.0
    %1630 = vmatpush2.msra.mxu0 0.0
    %1631 = vmatprep.subr.mxu0 0.0
    %1632 = vmatpush2.msra.mxu0 0.0
    %1633 = vmatprep.subr.mxu0 0.0
    %1634 = vmatpush2.msra.mxu0 0.0
    %1635 = vmatprep.subr.mxu0 0.0
    %1636 = vmatpush2.msra.mxu0 0.0
    %1637 = vmatprep.subr.mxu0 0.0
    %1638 = vmatpush2.msra.mxu0 0.0
    %1639 = vmatprep.mubr.f32.mxu0 0.0
    %1640 = vmatmul.mubr.f32.gmra.mxu0 %v1573
    %v1641 = vpop.f32.mrf.mxu0
    %v1642 = vadd.f32 0.0, %v1641
    %v1643 = vpop.f32.mrf.mxu0
    %1644 = vdwg.mxu0
    %1645 = vxpose.xlu0.b32.start [1/16] %v1642, 128
    %1646 = vxpose.xlu0.b32.cont [2/16] 0.0, 128
    %1647 = vxpose.xlu0.b32.cont [3/16] 0.0, 128
    %1648 = vxpose.xlu0.b32.cont [4/16] 0.0, 128
    %1649 = vxpose.xlu0.b32.cont [5/16] 0.0, 128
    %1650 = vxpose.xlu0.b32.cont [6/16] 0.0, 128
    %1651 = vxpose.xlu0.b32.cont [7/16] 0.0, 128
    %1652 = vxpose.xlu0.b32.cont [8/16] 0.0, 128
    %1653 = vxpose.xlu0.b32.cont [9/16] 0.0, 128
    %1654 = vxpose.xlu0.b32.cont [10/16] 0.0, 128
    %1655 = vxpose.xlu0.b32.cont [11/16] 0.0, 128
    %1656 = vxpose.xlu0.b32.cont [12/16] 0.0, 128
    %1657 = vxpose.xlu0.b32.cont [13/16] 0.0, 128
    %1658 = vxpose.xlu0.b32.cont [14/16] 0.0, 128
    %1659 = vxpose.xlu0.b32.cont [15/16] 0.0, 128
    %1660 = vxpose.xlu0.b32.end [16/16] 0.0, 128
    %v1661 = vpop.trf.xlu0
    %v1662 = vpop.trf.xlu0
    %v1663 = vpop.trf.xlu0
    %v1664 = vpop.trf.xlu0
    %v1665 = vpop.trf.xlu0
    %v1666 = vpop.trf.xlu0
    %v1667 = vpop.trf.xlu0
    %v1668 = vpop.trf.xlu0
    %v1669 = vpop.trf.xlu0
    %v1670 = vpop.trf.xlu0
    %v1671 = vpop.trf.xlu0
    %v1672 = vpop.trf.xlu0
    %v1673 = vpop.trf.xlu0
    %v1674 = vpop.trf.xlu0
    %v1675 = vpop.trf.xlu0
    %v1676 = vpop.trf.xlu0
    %1677 = vxpose.xlu0.b32.start [1/16] %v1551, 128
    %1678 = vxpose.xlu0.b32.cont [2/16] 0.0, 128
    %1679 = vxpose.xlu0.b32.cont [3/16] 0.0, 128
    %1680 = vxpose.xlu0.b32.cont [4/16] 0.0, 128
    %1681 = vxpose.xlu0.b32.cont [5/16] 0.0, 128
    %1682 = vxpose.xlu0.b32.cont [6/16] 0.0, 128
    %1683 = vxpose.xlu0.b32.cont [7/16] 0.0, 128
    %1684 = vxpose.xlu0.b32.cont [8/16] 0.0, 128
    %1685 = vxpose.xlu0.b32.cont [9/16] 0.0, 128
    %1686 = vxpose.xlu0.b32.cont [10/16] 0.0, 128
    %1687 = vxpose.xlu0.b32.cont [11/16] 0.0, 128
    %1688 = vxpose.xlu0.b32.cont [12/16] 0.0, 128
    %1689 = vxpose.xlu0.b32.cont [13/16] 0.0, 128
    %1690 = vxpose.xlu0.b32.cont [14/16] 0.0, 128
    %1691 = vxpose.xlu0.b32.cont [15/16] 0.0, 128
    %1692 = vxpose.xlu0.b32.end [16/16] 0.0, 128
    %v1693 = vpop.trf.xlu0
    %v1694 = vpop.trf.xlu0
    %v1695 = vpop.trf.xlu0
    %v1696 = vpop.trf.xlu0
    %v1697 = vpop.trf.xlu0
    %v1698 = vpop.trf.xlu0
    %v1699 = vpop.trf.xlu0
    %v1700 = vpop.trf.xlu0
    %v1701 = vpop.trf.xlu0
    %v1702 = vpop.trf.xlu0
    %v1703 = vpop.trf.xlu0
    %v1704 = vpop.trf.xlu0
    %v1705 = vpop.trf.xlu0
    %v1706 = vpop.trf.xlu0
    %v1707 = vpop.trf.xlu0
    %v1708 = vpop.trf.xlu0
    %1710 = vset.pattern.permute.xlu0 0
    %1711 = vperm.xlu0 %1710, %v1642
    %v1712 = vpop.permute.xlu0 %1711
    %v1714 = vlaneseq
    %v1715 = vshrl.u32 %v1714, 7
    %v1716 = vsub.s32 0, %v1715
    %v1717 = vrot.slane %v1661, %v1716
    %v1718 = vsub.f32 %v1712, %v1717
    %v1719 = vlaneseq
    %v1720 = vshrl.u32 %v1719, 7
    %v1721 = vsub.s32 0, %v1720
    %v1722 = vrot.slane %v1693, %v1721
    %v1723 = vadd.f32 %v1718, %v1722
    %v1724 = vsel %vm1564, %v1723, -1e+30
    %v1725 = vsel %vm1571, %v1724, -inf
    %1726 = vmax.xlane.f32.xlu0 %v1725
    %v1727 = vpop.xlane.xlu0 %1726
    %v1728 = vmax.f32 %v1642, %v1727
    %1730 = vset.pattern.permute.xlu0 0
    %1731 = vperm.xlu0 %1730, %v1728
    %v1732 = vpop.permute.xlu0 %1731
    %v1734 = vsub.f32 %v1723, %v1732
    %v1735 = vmul.f32 %v1734, 1.442695
    %v1736 = vpow.pop %v1735
    %v1737 = vsel %vm1564, %v1736, 0.0
    %1739 = vrot.lane.b32.xlu0 %v1553, 96
    %v1740 = vpop.permute.xlu0 %1739
    %v1742 = vsel %vm162, %v1549, 0
    %v1744 = vsel %vm162, %v1740, 0
    %1746 = vmatprep.subr.mxu0 0.0
    %1747 = vmatpush1.xpose.msra.mxu0 0.0
    %1748 = vmatprep.subr.mxu0 0.0
    %1749 = vmatpush1.xpose.msra.mxu0 0.0
    %1750 = vmatprep.subr.mxu0 0.0
    %1751 = vmatpush1.xpose.msra.mxu0 0.0
    %1752 = vmatprep.subr.mxu0 0.0
    %1753 = vmatpush1.xpose.msra.mxu0 0.0
    %1754 = vmatprep.subr.mxu0 0.0
    %1755 = vmatpush1.xpose.msra.mxu0 0.0
    %1756 = vmatprep.subr.mxu0 0.0
    %1757 = vmatpush1.xpose.msra.mxu0 0.0
    %1758 = vmatprep.subr.mxu0 0.0
    %1759 = vmatpush1.xpose.msra.mxu0 0.0
    %1760 = vmatprep.subr.mxu0 0.0
    %1761 = vmatpush1.xpose.msra.mxu0 0.0
    %1762 = vmatprep.subr.mxu0 0.0
    %1763 = vmatpush1.xpose.msra.mxu0 0.0
    %1764 = vmatprep.subr.mxu0 0.0
    %1765 = vmatpush1.xpose.msra.mxu0 0.0
    %1766 = vmatprep.subr.mxu0 0.0
    %1767 = vmatpush1.xpose.msra.mxu0 0.0
    %1768 = vmatprep.subr.mxu0 0.0
    %1769 = vmatpush1.xpose.msra.mxu0 0.0
    %1770 = vmatprep.subr.mxu0 0.0
    %1771 = vmatpush1.xpose.msra.mxu0 0.0
    %1772 = vmatprep.subr.mxu0 0.0
    %1773 = vmatpush1.xpose.msra.mxu0 0.0
    %1774 = vmatprep.subr.mxu0 0.0
    %1775 = vmatpush1.xpose.msra.mxu0 0.0
    %1776 = vmatprep.subr.mxu0 0.0
    %1777 = vmatpush1.xpose.msra.mxu0 %v1744
    %1778 = vmatprep.subr.mxu0 0.0
    %1779 = vmatpush2.xpose.msra.mxu0 0.0
    %1780 = vmatprep.subr.mxu0 0.0
    %1781 = vmatpush2.xpose.msra.mxu0 0.0
    %1782 = vmatprep.subr.mxu0 0.0
    %1783 = vmatpush2.xpose.msra.mxu0 0.0
    %1784 = vmatprep.subr.mxu0 0.0
    %1785 = vmatpush2.xpose.msra.mxu0 0.0
    %1786 = vmatprep.subr.mxu0 0.0
    %1787 = vmatpush2.xpose.msra.mxu0 0.0
    %1788 = vmatprep.subr.mxu0 0.0
    %1789 = vmatpush2.xpose.msra.mxu0 0.0
    %1790 = vmatprep.subr.mxu0 0.0
    %1791 = vmatpush2.xpose.msra.mxu0 0.0
    %1792 = vmatprep.subr.mxu0 0.0
    %1793 = vmatpush2.xpose.msra.mxu0 0.0
    %1794 = vmatprep.subr.mxu0 0.0
    %1795 = vmatpush2.xpose.msra.mxu0 0.0
    %1796 = vmatprep.subr.mxu0 0.0
    %1797 = vmatpush2.xpose.msra.mxu0 0.0
    %1798 = vmatprep.subr.mxu0 0.0
    %1799 = vmatpush2.xpose.msra.mxu0 0.0
    %1800 = vmatprep.subr.mxu0 0.0
    %1801 = vmatpush2.xpose.msra.mxu0 0.0
    %1802 = vmatprep.subr.mxu0 0.0
    %1803 = vmatpush2.xpose.msra.mxu0 0.0
    %1804 = vmatprep.subr.mxu0 0.0
    %1805 = vmatpush2.xpose.msra.mxu0 0.0
    %1806 = vmatprep.subr.mxu0 0.0
    %1807 = vmatpush2.xpose.msra.mxu0 0.0
    %1808 = vmatprep.subr.mxu0 0.0
    %1809 = vmatpush2.xpose.msra.mxu0 0.0
    %1810 = vmatprep.mubr.f32.mxu0 0.0
    %1811 = vmatmul.mubr.f32.gmra.mxu0 %v1742
    %v1812 = vpop.f32.mrf.mxu0
    %v1813 = vadd.f32 0.0, %v1812
    %v1814 = vpop.f32.mrf.mxu0
    %1815 = vdwg.mxu0
    %v1816 = vmul.f32 %v1737, %v1813
    %1817 = vrot.lane.b32.xlu0 %v1549, 64
    %v1818 = vpop.permute.xlu0 %1817
    %v1821 = vsel %vm1571, %v1816, 0
    %1823 = vmatprep.subr.mxu0 0.0
    %1824 = vmatpush1.msra.mxu0 0.0
    %1825 = vmatprep.subr.mxu0 0.0
    %1826 = vmatpush1.msra.mxu0 0.0
    %1827 = vmatprep.subr.mxu0 0.0
    %1828 = vmatpush1.msra.mxu0 0.0
    %1829 = vmatprep.subr.mxu0 0.0
    %1830 = vmatpush1.msra.mxu0 0.0
    %1831 = vmatprep.subr.mxu0 0.0
    %1832 = vmatpush1.msra.mxu0 0.0
    %1833 = vmatprep.subr.mxu0 0.0
    %1834 = vmatpush1.msra.mxu0 0.0
    %1835 = vmatprep.subr.mxu0 0.0
    %1836 = vmatpush1.msra.mxu0 0.0
    %1837 = vmatprep.subr.mxu0 0.0
    %1838 = vmatpush1.msra.mxu0 0.0
    %1839 = vmatprep.subr.mxu0 0.0
    %1840 = vmatpush1.msra.mxu0 0.0
    %1841 = vmatprep.subr.mxu0 0.0
    %1842 = vmatpush1.msra.mxu0 0.0
    %1843 = vmatprep.subr.mxu0 0.0
    %1844 = vmatpush1.msra.mxu0 0.0
    %1845 = vmatprep.subr.mxu0 0.0
    %1846 = vmatpush1.msra.mxu0 0.0
    %1847 = vmatprep.subr.mxu0 0.0
    %1848 = vmatpush1.msra.mxu0 0.0
    %1849 = vmatprep.subr.mxu0 0.0
    %1850 = vmatpush1.msra.mxu0 0.0
    %1851 = vmatprep.subr.mxu0 0.0
    %1852 = vmatpush1.msra.mxu0 0.0
    %1853 = vmatprep.subr.mxu0 0.0
    %1854 = vmatpush1.msra.mxu0 %v1818
    %1855 = vmatprep.subr.mxu0 0.0
    %1856 = vmatpush2.msra.mxu0 0.0
    %1857 = vmatprep.subr.mxu0 0.0
    %1858 = vmatpush2.msra.mxu0 0.0
    %1859 = vmatprep.subr.mxu0 0.0
    %1860 = vmatpush2.msra.mxu0 0.0
    %1861 = vmatprep.subr.mxu0 0.0
    %1862 = vmatpush2.msra.mxu0 0.0
    %1863 = vmatprep.subr.mxu0 0.0
    %1864 = vmatpush2.msra.mxu0 0.0
    %1865 = vmatprep.subr.mxu0 0.0
    %1866 = vmatpush2.msra.mxu0 0.0
    %1867 = vmatprep.subr.mxu0 0.0
    %1868 = vmatpush2.msra.mxu0 0.0
    %1869 = vmatprep.subr.mxu0 0.0
    %1870 = vmatpush2.msra.mxu0 0.0
    %1871 = vmatprep.subr.mxu0 0.0
    %1872 = vmatpush2.msra.mxu0 0.0
    %1873 = vmatprep.subr.mxu0 0.0
    %1874 = vmatpush2.msra.mxu0 0.0
    %1875 = vmatprep.subr.mxu0 0.0
    %1876 = vmatpush2.msra.mxu0 0.0
    %1877 = vmatprep.subr.mxu0 0.0
    %1878 = vmatpush2.msra.mxu0 0.0
    %1879 = vmatprep.subr.mxu0 0.0
    %1880 = vmatpush2.msra.mxu0 0.0
    %1881 = vmatprep.subr.mxu0 0.0
    %1882 = vmatpush2.msra.mxu0 0.0
    %1883 = vmatprep.subr.mxu0 0.0
    %1884 = vmatpush2.msra.mxu0 0.0
    %1885 = vmatprep.subr.mxu0 0.0
    %1886 = vmatpush2.msra.mxu0 0.0
    %1887 = vmatprep.mubr.f32.mxu0 0.0
    %1888 = vmatmul.mubr.f32.gmra.mxu0 %v1821
    %v1889 = vpop.f32.mrf.mxu0
    %v1890 = vadd.f32 0.0, %v1889
    %v1891 = vpop.f32.mrf.mxu0
    %1892 = vdwg.mxu0
    %v1893 = vsel %vm1571, %v1816, 0.0
    %1894 = vadd.xlane.f32.xlu0 %v1893
    %v1895 = vpop.xlane.xlu0 %1894
    %v1896 = vand.u32 2147483647, %v1895
    %v1897 = vmax.f32 %v1896, 1.0
    %1899 = vrot.lane.b32.xlu0 %v1890, 96
    %v1900 = vpop.permute.xlu0 %1899
    %v1902 = vmul.f32 %v1559, %v1900
    %v1903 = vrcp.pop %v1897
    %v1904 = vmul.f32 %v1902, %v1903
    %1906 = vrot.lane.b32.xlu0 %v1904, 32
    %v1907 = vpop.permute.xlu0 %1906
    %v1908 = vsel %vm162, %v1907, 0
    %1910 = vmatprep.subr.mxu0 0.0
    %1911 = vmatpush1.msra.mxu0 0.0
    %1912 = vmatprep.subr.mxu0 0.0
    %1913 = vmatpush1.msra.mxu0 0.0
    %1914 = vmatprep.subr.mxu0 0.0
    %1915 = vmatpush1.msra.mxu0 0.0
    %1916 = vmatprep.subr.mxu0 0.0
    %1917 = vmatpush1.msra.mxu0 0.0
    %1918 = vmatprep.subr.mxu0 0.0
    %1919 = vmatpush1.msra.mxu0 0.0
    %1920 = vmatprep.subr.mxu0 0.0
    %1921 = vmatpush1.msra.mxu0 0.0
    %1922 = vmatprep.subr.mxu0 0.0
    %1923 = vmatpush1.msra.mxu0 0.0
    %1924 = vmatprep.subr.mxu0 0.0
    %1925 = vmatpush1.msra.mxu0 0.0
    %1926 = vmatprep.subr.mxu0 0.0
    %1927 = vmatpush1.msra.mxu0 0.0
    %1928 = vmatprep.subr.mxu0 0.0
    %1929 = vmatpush1.msra.mxu0 0.0
    %1930 = vmatprep.subr.mxu0 0.0
    %1931 = vmatpush1.msra.mxu0 0.0
    %1932 = vmatprep.subr.mxu0 0.0
    %1933 = vmatpush1.msra.mxu0 0.0
    %1934 = vmatprep.subr.mxu0 0.0
    %1935 = vmatpush1.msra.mxu0 %v1457
    %1936 = vmatprep.subr.mxu0 0.0
    %1937 = vmatpush1.msra.mxu0 %v1456
    %1938 = vmatprep.subr.mxu0 0.0
    %1939 = vmatpush1.msra.mxu0 %v1455
    %1940 = vmatprep.subr.mxu0 0.0
    %1941 = vmatpush1.msra.mxu0 %v1454
    %1942 = vmatprep.subr.mxu0 0.0
    %1943 = vmatpush2.msra.mxu0 0.0
    %1944 = vmatprep.subr.mxu0 0.0
    %1945 = vmatpush2.msra.mxu0 0.0
    %1946 = vmatprep.subr.mxu0 0.0
    %1947 = vmatpush2.msra.mxu0 0.0
    %1948 = vmatprep.subr.mxu0 0.0
    %1949 = vmatpush2.msra.mxu0 0.0
    %1950 = vmatprep.subr.mxu0 0.0
    %1951 = vmatpush2.msra.mxu0 0.0
    %1952 = vmatprep.subr.mxu0 0.0
    %1953 = vmatpush2.msra.mxu0 0.0
    %1954 = vmatprep.subr.mxu0 0.0
    %1955 = vmatpush2.msra.mxu0 0.0
    %1956 = vmatprep.subr.mxu0 0.0
    %1957 = vmatpush2.msra.mxu0 0.0
    %1958 = vmatprep.subr.mxu0 0.0
    %1959 = vmatpush2.msra.mxu0 0.0
    %1960 = vmatprep.subr.mxu0 0.0
    %1961 = vmatpush2.msra.mxu0 0.0
    %1962 = vmatprep.subr.mxu0 0.0
    %1963 = vmatpush2.msra.mxu0 0.0
    %1964 = vmatprep.subr.mxu0 0.0
    %1965 = vmatpush2.msra.mxu0 0.0
    %1966 = vmatprep.subr.mxu0 0.0
    %1967 = vmatpush2.msra.mxu0 0.0
    %1968 = vmatprep.subr.mxu0 0.0
    %1969 = vmatpush2.msra.mxu0 0.0
    %1970 = vmatprep.subr.mxu0 0.0
    %1971 = vmatpush2.msra.mxu0 0.0
    %1972 = vmatprep.subr.mxu0 0.0
    %1973 = vmatpush2.msra.mxu0 0.0
    %1974 = vmatprep.mubr.f32.mxu0 0.0
    %1975 = vmatmul.mubr.f32.gmra.mxu0 %v1908
    %v1976 = vpop.f32.mrf.mxu0
    %v1977 = vadd.f32 0.0, %v1976
    %v1978 = vpop.f32.mrf.mxu0
    %1979 = vdwg.mxu0
    %v1980 = vmul.f32 %v1977, %v1977
    %v1981 = vmul.f32 %v1977, %v1980
    %v1982 = vmul.f32 %v1981, 0.044715
    %v1983 = vadd.f32 %v1977, %v1982
    %v1984 = vmul.f32 %v1983, 0.7978846
    %v1985 = vtanh.pop %v1984
    %v1986 = vadd.f32 %v1985, 1.0
    %v1987 = vmul.f32 %v1986, 0.5
    %v1988 = vmul.f32 %v1977, %v1987
    %v1990 = vsel %vm1366, %v1988, 0
    %1992 = vmatprep.subr.mxu0 0.0
    %1993 = vmatpush1.msra.mxu0 0.0
    %1994 = vmatprep.subr.mxu0 0.0
    %1995 = vmatpush1.msra.mxu0 0.0
    %1996 = vmatprep.subr.mxu0 0.0
    %1997 = vmatpush1.msra.mxu0 0.0
    %1998 = vmatprep.subr.mxu0 0.0
    %1999 = vmatpush1.msra.mxu0 0.0
    %2000 = vmatprep.subr.mxu0 0.0
    %2001 = vmatpush1.msra.mxu0 0.0
    %2002 = vmatprep.subr.mxu0 0.0
    %2003 = vmatpush1.msra.mxu0 0.0
    %2004 = vmatprep.subr.mxu0 0.0
    %2005 = vmatpush1.msra.mxu0 0.0
    %2006 = vmatprep.subr.mxu0 0.0
    %2007 = vmatpush1.msra.mxu0 0.0
    %2008 = vmatprep.subr.mxu0 0.0
    %2009 = vmatpush1.msra.mxu0 %v1465
    %2010 = vmatprep.subr.mxu0 0.0
    %2011 = vmatpush1.msra.mxu0 %v1464
    %2012 = vmatprep.subr.mxu0 0.0
    %2013 = vmatpush1.msra.mxu0 %v1463
    %2014 = vmatprep.subr.mxu0 0.0
    %2015 = vmatpush1.msra.mxu0 %v1462
    %2016 = vmatprep.subr.mxu0 0.0
    %2017 = vmatpush1.msra.mxu0 %v1461
    %2018 = vmatprep.subr.mxu0 0.0
    %2019 = vmatpush1.msra.mxu0 %v1460
    %2020 = vmatprep.subr.mxu0 0.0
    %2021 = vmatpush1.msra.mxu0 %v1459
    %2022 = vmatprep.subr.mxu0 0.0
    %2023 = vmatpush1.msra.mxu0 %v1458
    %2024 = vmatprep.subr.mxu0 0.0
    %2025 = vmatpush2.msra.mxu0 0.0
    %2026 = vmatprep.subr.mxu0 0.0
    %2027 = vmatpush2.msra.mxu0 0.0
    %2028 = vmatprep.subr.mxu0 0.0
    %2029 = vmatpush2.msra.mxu0 0.0
    %2030 = vmatprep.subr.mxu0 0.0
    %2031 = vmatpush2.msra.mxu0 0.0
    %2032 = vmatprep.subr.mxu0 0.0
    %2033 = vmatpush2.msra.mxu0 0.0
    %2034 = vmatprep.subr.mxu0 0.0
    %2035 = vmatpush2.msra.mxu0 0.0
    %2036 = vmatprep.subr.mxu0 0.0
    %2037 = vmatpush2.msra.mxu0 0.0
    %2038 = vmatprep.subr.mxu0 0.0
    %2039 = vmatpush2.msra.mxu0 0.0
    %2040 = vmatprep.subr.mxu0 0.0
    %2041 = vmatpush2.msra.mxu0 0.0
    %2042 = vmatprep.subr.mxu0 0.0
    %2043 = vmatpush2.msra.mxu0 0.0
    %2044 = vmatprep.subr.mxu0 0.0
    %2045 = vmatpush2.msra.mxu0 0.0
    %2046 = vmatprep.subr.mxu0 0.0
    %2047 = vmatpush2.msra.mxu0 0.0
    %2048 = vmatprep.subr.mxu0 0.0
    %2049 = vmatpush2.msra.mxu0 0.0
    %2050 = vmatprep.subr.mxu0 0.0
    %2051 = vmatpush2.msra.mxu0 0.0
    %2052 = vmatprep.subr.mxu0 0.0
    %2053 = vmatpush2.msra.mxu0 0.0
    %2054 = vmatprep.subr.mxu0 0.0
    %2055 = vmatpush2.msra.mxu0 0.0
    %2056 = vmatprep.mubr.f32.mxu0 0.0
    %2057 = vmatmul.mubr.f32.gmra.mxu0 %v1990
    %v2058 = vpop.f32.mrf.mxu0
    %v2059 = vadd.f32 0.0, %v2058
    %v2060 = vpop.f32.mrf.mxu0
    %2061 = vdwg.mxu0
    %2063 = vrot.lane.b32.xlu0 %v2059, 96
    %v2064 = vpop.permute.xlu0 %2063
    %v2066 = vadd.f32 %v1904, %v2064
    %2068 = vrot.lane.b32.xlu0 %v2066, 32
    %v2069 = vpop.permute.xlu0 %2068
    %vm2071 = vcmask 261127
    %2072 = vst.msk [vmem:[#allocation7 - $0x7] sm:$0x80] %vm2071, %v2069
    // Predicated region
    $region50: #{tpu_custom_call.1} parent=1 // pred_check
      _
    $region51: #{tpu_custom_call.1} parent=1 // pred_check_branch
      %2074 = sbr.rel (0) target = $region53
    $region52: #{tpu_custom_call.1} parent=1 // pred_region
      %s2076 = ssub.s32 16, 16
      %2077 = vsyncadd [#allocation4], %s2076
      %s2079 = sshll.u32 [#allocation7], 4
      %s2080 = int_to_ptr.vmem [resolvable:$true] %s2079
      %2082 = dma.vmem_to_hbm [thread:$0]  %s2080, 16, %s10, [#allocation4]
    $region53: #{tpu_custom_call.1} parent=1 // pred_fallthru
      _
    // Predicated region
    $region54: #{tpu_custom_call.1} parent=1 // pred_check
      _
    $region55: #{tpu_custom_call.1} parent=1 // pred_check_branch
      %2084 = sbr.rel (0) target = $region57
    $region56: #{tpu_custom_call.1} parent=1 // pred_region
      %2085 = dma.done [#allocation4], 16
    $region57: #{tpu_custom_call.1} parent=1 // pred_fallthru
      _
    %2086 = vsyncpa [#allocation3], 1
    %2087 = vsyncpa [#allocation6], 1
    %2088 = vsyncpa [#allocation4], 1

</llo_original>
